<compile_context>
chip_gen: v7x
topology: tpu7x:2x2x1
jax: 0.10.0
libtpu: 0.0.40
codegen_flags: <defaults>
</compile_context>

<pallas_src>
import jax
import jax.numpy as jnp
from jax.experimental import pallas as pl
from jax.experimental.pallas import tpu as pltpu

_LANE = 128
_SUBLANE = 8


def _ensemble_fused_kernel(x_ref,     # VMEM (TN, D)     bf16
                           w1_ref,    # VMEM (D, M*H)    bf16  (all first layers, fused)
                           b1_ref,    # VMEM (1, M*H)    f32
                           wb_ref,    # VMEM (1, M*H)    f32   softmax(w)/M repeated per-H
                           w2_ref,    # VMEM (M*H, Kp)   bf16  (all second layers, stacked)
                           b2w_ref,   # VMEM (1, Kp)     f32   sum_m w_m * b2_m
                           y_ref,     # VMEM (TN, Kp)    f32   weighted-mean logits
                           act_ref):  # VMEM (TN, H)     f32   last model's hidden
    mh = w1_ref.shape[1]
    hid = act_ref.shape[1]

    # First layer for ALL models: one MXU matmul, lane-dense (TN, M*H).
    h_all = jnp.dot(x_ref[...], w1_ref[...],
                    preferred_element_type=jnp.float32)            # (TN, M*H) f32
    h_all = jnp.maximum(h_all + b1_ref[...], 0.0)

    # acts of the LAST model (unweighted), 128-aligned static slice.
    act_ref[...] = h_all[:, mh - hid:].astype(act_ref.dtype)

    # Weighted mean over models, fused into a single second-layer matmul:
    #   sum_m w_m * (h_m @ W2_m)  ==  (h_all * w_bcast) @ concat_m(W2_m)
    h_w = (h_all * wb_ref[...]).astype(jnp.bfloat16)                # VPU scale (free)
    acc = jnp.dot(h_w, w2_ref[...],
                  preferred_element_type=jnp.float32)               # (TN, Kp) f32

    y_ref[...] = (acc + b2w_ref[...]).astype(y_ref.dtype)


def _round_up(a, b):
    return ((a + b - 1) // b) * b


def ensemble_forward(x, params, weights=None):
    """x: (N, C, H, W) f32.  params: stacked per-model MLP weights."""
    W1, b1, W2, b2 = params["W1"], params["b1"], params["W2"], params["b2"]
    M, D, H = W1.shape
    K = W2.shape[-1]
    N = x.shape[0]
    MH = M * H

    x_flat = x.reshape(N, -1).astype(jnp.float32)
    assert x_flat.shape[1] == D

    # PyTorch forward divides by M in BOTH paths (mean over models of the
    # (optionally softmax-weighted) logits) -> fold 1/M into w_vec here.
    if weights is not None:
        w_vec = jax.nn.softmax(weights.astype(jnp.float32), axis=0) / M
    else:
        w_vec = jnp.full((M,), 1.0 / M, jnp.float32)

    # Lane-dense output: zero-pad the class axis to a multiple of 128.
    Kp = _round_up(K, _LANE)
    # Batch tiles: multiples of 8 sublanes; 128-row MXU tiles once N is large.
    TN = _LANE if N >= _LANE else _round_up(N, _SUBLANE)
    Np = _round_up(N, TN)

    # bf16 weight / activation streaming; f32 only in accumulators & biases.
    x_pad = jnp.zeros((Np, D), jnp.bfloat16).at[:N].set(x_flat.astype(jnp.bfloat16))
    W1_all = jnp.transpose(W1, (1, 0, 2)).reshape(D, MH).astype(jnp.bfloat16)
    b1_all = b1.reshape(1, MH).astype(jnp.float32)
    w_bcast = jnp.repeat(w_vec, H).reshape(1, MH).astype(jnp.float32)
    W2_cat = jnp.zeros((MH, Kp), jnp.bfloat16).at[:, :K].set(
        W2.reshape(MH, K).astype(jnp.bfloat16))
    b2w = jnp.zeros((1, Kp), jnp.float32).at[0, :K].set(
        (w_vec[:, None] * b2.astype(jnp.float32)).sum(axis=0))

    grid = (Np // TN,)

    grid_spec = pltpu.PrefetchScalarGridSpec(
        num_scalar_prefetch=0,
        grid=grid,
        in_specs=[
            pl.BlockSpec((TN, D), lambda i: (i, 0)),                  # x
            pl.BlockSpec((D, MH), lambda i: (0, 0)),                  # fused W1
            pl.BlockSpec((1, MH), lambda i: (0, 0)),                  # fused b1
            pl.BlockSpec((1, MH), lambda i: (0, 0)),                  # per-model scale row
            pl.BlockSpec((MH, Kp), lambda i: (0, 0)),                 # stacked W2 (padded)
            pl.BlockSpec((1, Kp), lambda i: (0, 0)),                  # weighted b2
        ],
        out_specs=[
            pl.BlockSpec((TN, Kp), lambda i: (i, 0)),                 # logits (padded)
            pl.BlockSpec((TN, H), lambda i: (i, 0)),                  # last acts
        ],
    )

    flops = 2 * Np * D * MH + 2 * Np * MH * Kp
    bytes_accessed = (x_pad.size * 2 + W1_all.size * 2 + W2_cat.size * 2
                      + b1_all.size * 4 + w_bcast.size * 4 + b2w.size * 4
                      + Np * Kp * 4 + Np * H * 4)

    y_pad, act_pad = pl.pallas_call(
        _ensemble_fused_kernel,
        out_shape=(jax.ShapeDtypeStruct((Np, Kp), jnp.float32),
                   jax.ShapeDtypeStruct((Np, H), jnp.float32)),
        grid_spec=grid_spec,
        compiler_params=pltpu.CompilerParams(
            dimension_semantics=("parallel",)),   # batch tiles shard across TCs
        cost_estimate=pl.CostEstimate(flops=flops, transcendentals=0,
                                      bytes_accessed=bytes_accessed),
    )(x_pad, W1_all, b1_all, w_bcast, W2_cat, b2w)

    # PyTorch returns (y_out, acts) with acts = extra outputs of the LAST model.
    return y_pad[:N, :K], [act_pad[:N, :]]


def _reference(x, params, weights=None):
    """Pure-JAX reference mirroring the kernel's bf16-input / f32-accumulate math."""
    W1, b1, W2, b2 = params["W1"], params["b1"], params["W2"], params["b2"]
    M = W1.shape[0]
    xf = x.reshape(x.shape[0], -1)
    xb = xf.astype(jnp.bfloat16).astype(jnp.float32)
    if weights is not None:
        w = jax.nn.softmax(weights.astype(jnp.float32), axis=0) / M
    else:
        w = jnp.full((M,), 1.0 / M, jnp.float32)
    y, h = 0.0, None
    for m in range(M):
        W1b = W1[m].astype(jnp.bfloat16).astype(jnp.float32)
        W2b = W2[m].astype(jnp.bfloat16).astype(jnp.float32)
        h = jnp.maximum(xb @ W1b + b1[m], 0.0)
        hw = (h * w[m]).astype(jnp.bfloat16).astype(jnp.float32)
        y = y + hw @ W2b + w[m] * b2[m]
    return y, h


if __name__ == "__main__":
    # small shapes consistent with an NCHW image-classifier ensemble
    N, C, Himg, Wimg = 2, 4, 16, 16          # batch, channels, spatial
    M = 3                                    # ensemble members
    D = C * Himg * Wimg                      # 1024 flattened features
    HID = 128                                # hidden width
    K = 16                                   # classes

    key = jax.random.PRNGKey(0)
    kx, kw1, kb1, kw2, kb2, kw = jax.random.split(key, 6)

    x = jax.random.normal(kx, (N, C, Himg, Wimg), jnp.float32)
    params = {
        "W1": jax.random.normal(kw1, (M, D, HID), jnp.float32) * 0.02,
        "b1": jax.random.normal(kb1, (M, HID), jnp.float32) * 0.1,
        "W2": jax.random.normal(kw2, (M, HID, K), jnp.float32) * 0.05,
        "b2": jax.random.normal(kb2, (M, K), jnp.float32) * 0.1,
    }
    ens_weights = jax.random.normal(kw, (M,), jnp.float32)

    # weighted path
    y_out, acts = ensemble_forward(x, params, weights=ens_weights)
    jax.block_until_ready(y_out)
    y_ref, act_ref = _reference(x, params, weights=ens_weights)

    # unweighted path (weights=None)
    y_out0, acts0 = ensemble_forward(x, params, weights=None)
    jax.block_until_ready(y_out0)
    y_ref0, _ = _reference(x, params, weights=None)

    assert jnp.allclose(y_out, y_ref, atol=2e-3, rtol=2e-3), "weighted mean mismatch"
    assert jnp.allclose(acts[0], act_ref, atol=2e-3, rtol=2e-3), "acts mismatch"
    assert jnp.allclose(y_out0, y_ref0, atol=2e-3, rtol=2e-3), "unweighted mean mismatch"

    print("KERNEL_OK")
</pallas_src>

<mosaic_0001>
module attributes {stable_mosaic.version = 11 : i64} {
  func.func @_ensemble_fused_kernel(%arg0: i32, %arg1: memref<8x1024xbf16, #tpu.memory_space<vmem>>, %arg2: memref<1024x384xbf16, #tpu.memory_space<vmem>>, %arg3: memref<1x384xf32, #tpu.memory_space<vmem>>, %arg4: memref<1x384xf32, #tpu.memory_space<vmem>>, %arg5: memref<384x128xbf16, #tpu.memory_space<vmem>>, %arg6: memref<1x128xf32, #tpu.memory_space<vmem>>, %arg7: memref<8x128xf32, #tpu.memory_space<vmem>>, %arg8: memref<8x128xf32, #tpu.memory_space<vmem>>) attributes {dimension_semantics = [#tpu.dimension_semantics<parallel>], iteration_bounds = array<i64: 1>, scalar_prefetch = 0 : i64, scratch_operands = 0 : i64, tpu.core_type = #tpu.core_type<tc>, window_params = [{transform_indices = @transform_0, window_bounds = array<i64: 8, 1024>}, {pipeline_mode = #tpu.pipeline_mode<synchronous>, transform_indices = @transform_1, window_bounds = array<i64: 1024, 384>}, {pipeline_mode = #tpu.pipeline_mode<synchronous>, transform_indices = @transform_2, window_bounds = array<i64: 1, 384>}, {pipeline_mode = #tpu.pipeline_mode<synchronous>, transform_indices = @transform_3, window_bounds = array<i64: 1, 384>}, {pipeline_mode = #tpu.pipeline_mode<synchronous>, transform_indices = @transform_4, window_bounds = array<i64: 384, 128>}, {pipeline_mode = #tpu.pipeline_mode<synchronous>, transform_indices = @transform_5, window_bounds = array<i64: 1, 128>}, {transform_indices = @transform_6, window_bounds = array<i64: 8, 128>}, {transform_indices = @transform_7, window_bounds = array<i64: 8, 128>}]} {
    %c0 = arith.constant 0 : index
    %c0_0 = arith.constant 0 : index
    %0 = vector.load %arg1[%c0, %c0_0] : memref<8x1024xbf16, #tpu.memory_space<vmem>>, vector<8x1024xbf16>
    %c0_1 = arith.constant 0 : index
    %c0_2 = arith.constant 0 : index
    %1 = vector.load %arg2[%c0_1, %c0_2] : memref<1024x384xbf16, #tpu.memory_space<vmem>>, vector<1024x384xbf16>
    %cst = arith.constant dense<0.000000e+00> : vector<8x384xf32>
    %2 = tpu.matmul %0, %1, %cst {dimension_numbers = #tpu.dot_dimension_numbers<[1], [0], [0], [1], [0, 0, 1, 1], [], []>} : vector<8x1024xbf16>, vector<1024x384xbf16>, vector<8x384xf32> -> vector<8x384xf32>
    %c0_3 = arith.constant 0 : index
    %c0_4 = arith.constant 0 : index
    %3 = vector.load %arg3[%c0_3, %c0_4] : memref<1x384xf32, #tpu.memory_space<vmem>>, vector<1x384xf32>
    %4 = vector.broadcast %3 : vector<1x384xf32> to vector<8x384xf32>
    %5 = arith.addf %2, %4 : vector<8x384xf32>
    %cst_5 = arith.constant 0.000000e+00 : f32
    %6 = vector.broadcast %cst_5 : f32 to vector<8x384xf32>
    %7 = arith.maximumf %5, %6 : vector<8x384xf32>
    %8 = vector.extract_strided_slice %7 {offsets = [0, 256], sizes = [8, 128], strides = [1, 1]} : vector<8x384xf32> to vector<8x128xf32>
    %c0_6 = arith.constant 0 : index
    %c0_7 = arith.constant 0 : index
    %9 = vector.load %arg8[%c0_6, %c0_7] : memref<8x128xf32, #tpu.memory_space<vmem>>, vector<8x128xf32>
    tpu.vector_store %arg8[%c0_6, %c0_7], %8 {strides = array<i32>} : memref<8x128xf32, #tpu.memory_space<vmem>>, vector<8x128xf32>,
    %c0_8 = arith.constant 0 : index
    %c0_9 = arith.constant 0 : index
    %10 = vector.load %arg4[%c0_8, %c0_9] : memref<1x384xf32, #tpu.memory_space<vmem>>, vector<1x384xf32>
    %11 = vector.broadcast %10 : vector<1x384xf32> to vector<8x384xf32>
    %12 = arith.mulf %7, %11 : vector<8x384xf32>
    %13 = arith.truncf %12 : vector<8x384xf32> to vector<8x384xbf16>
    %c0_10 = arith.constant 0 : index
    %c0_11 = arith.constant 0 : index
    %14 = vector.load %arg5[%c0_10, %c0_11] : memref<384x128xbf16, #tpu.memory_space<vmem>>, vector<384x128xbf16>
    %cst_12 = arith.constant dense<0.000000e+00> : vector<8x128xf32>
    %15 = tpu.matmul %13, %14, %cst_12 {dimension_numbers = #tpu.dot_dimension_numbers<[1], [0], [0], [1], [0, 0, 1, 1], [], []>} : vector<8x384xbf16>, vector<384x128xbf16>, vector<8x128xf32> -> vector<8x128xf32>
    %c0_13 = arith.constant 0 : index
    %c0_14 = arith.constant 0 : index
    %16 = vector.load %arg6[%c0_13, %c0_14] : memref<1x128xf32, #tpu.memory_space<vmem>>, vector<1x128xf32>
    %17 = vector.broadcast %16 : vector<1x128xf32> to vector<8x128xf32>
    %18 = arith.addf %15, %17 : vector<8x128xf32>
    %c0_15 = arith.constant 0 : index
    %c0_16 = arith.constant 0 : index
    %19 = vector.load %arg7[%c0_15, %c0_16] : memref<8x128xf32, #tpu.memory_space<vmem>>, vector<8x128xf32>
    tpu.vector_store %arg7[%c0_15, %c0_16], %18 {strides = array<i32>} : memref<8x128xf32, #tpu.memory_space<vmem>>, vector<8x128xf32>,
    return
  }
  func.func @transform_0(%arg0: i32) -> (i32, i32) {
    %c0_i32 = arith.constant 0 : i32
    %c0_i32_0 = arith.constant 0 : i32
    return %arg0, %c0_i32 : i32, i32
  }
  func.func @transform_1(%arg0: i32) -> (i32, i32) {
    %c0_i32 = arith.constant 0 : i32
    %c0_i32_0 = arith.constant 0 : i32
    %c0_i32_1 = arith.constant 0 : i32
    return %c0_i32, %c0_i32_0 : i32, i32
  }
  func.func @transform_2(%arg0: i32) -> (i32, i32) {
    %c0_i32 = arith.constant 0 : i32
    %c0_i32_0 = arith.constant 0 : i32
    %c0_i32_1 = arith.constant 0 : i32
    return %c0_i32, %c0_i32_0 : i32, i32
  }
  func.func @transform_3(%arg0: i32) -> (i32, i32) {
    %c0_i32 = arith.constant 0 : i32
    %c0_i32_0 = arith.constant 0 : i32
    %c0_i32_1 = arith.constant 0 : i32
    return %c0_i32, %c0_i32_0 : i32, i32
  }
  func.func @transform_4(%arg0: i32) -> (i32, i32) {
    %c0_i32 = arith.constant 0 : i32
    %c0_i32_0 = arith.constant 0 : i32
    %c0_i32_1 = arith.constant 0 : i32
    return %c0_i32, %c0_i32_0 : i32, i32
  }
  func.func @transform_5(%arg0: i32) -> (i32, i32) {
    %c0_i32 = arith.constant 0 : i32
    %c0_i32_0 = arith.constant 0 : i32
    %c0_i32_1 = arith.constant 0 : i32
    return %c0_i32, %c0_i32_0 : i32, i32
  }
  func.func @transform_6(%arg0: i32) -> (i32, i32) {
    %c0_i32 = arith.constant 0 : i32
    %c0_i32_0 = arith.constant 0 : i32
    return %arg0, %c0_i32 : i32, i32
  }
  func.func @transform_7(%arg0: i32) -> (i32, i32) {
    %c0_i32 = arith.constant 0 : i32
    %c0_i32_0 = arith.constant 0 : i32
    return %arg0, %c0_i32 : i32, i32
  }
}

</mosaic_0001>

<llo_original>
// kernel: tpu_custom_call.1
$region0: #{tpu_custom_call.1}
  #allocation0 [shape = 'u32[]', space=smem, size = 0x4, offset = 0x4, fixed_abs, tag = 'smem constant byte address 0x4 - core index']
  #allocation1 [shape = 'u32[144,128]{1,0:T(1,128)}', space=vmem, size = 0x12000, scoped, tag = 'internal scratch']
  %s0 = inlined_call_operand.hbm [shape: bf16[8,1024], index: 0, kind: input, shape index: {}]
  %s1 = inlined_call_operand.hbm [shape: bf16[1024,384], index: 1, kind: input, shape index: {}]
  %s2 = inlined_call_operand.vmem [shape: f32[1,384], index: 2, kind: input, shape index: {}]
  %s3 = inlined_call_operand.vmem [shape: f32[1,384], index: 3, kind: input, shape index: {}]
  %s4 = inlined_call_operand.hbm [shape: bf16[384,128], index: 4, kind: input, shape index: {}]
  %s5 = inlined_call_operand.vmem [shape: f32[1,128], index: 5, kind: input, shape index: {}]
  %s6 = inlined_call_operand.hbm [shape: f32[8,128], index: 6, kind: output, shape index: {0}]
  %s7 = inlined_call_operand.hbm [shape: f32[8,128], index: 7, kind: output, shape index: {1}]
  %8 = xla_tuple %s6, %s7
  %s9 = sld [smem:[#allocation0]]
  $region54: #{tpu_custom_call.1} parent=0
    _
  %s11 = ssub.s32 1, %s9
  %s12 = scalar_select 0, %s11, %s9
  $region1: #{tpu_custom_call.1} parent=0
    #allocation2 [shape = 'u8[16384]{0}', space=vmem, size = 0x4000, scoped, tag = 'input window, operand 0, single buffered']
    #allocation3 [shape = 's32[1]{0}', space=sflag, size = 0x4, scoped, tag = 'scoped memory for tpu_custom_call.1']
    #allocation4 [shape = 's32[1]{0}', space=sflag, size = 0x4, scoped, tag = 'scoped memory for tpu_custom_call.1']
    #allocation5 [shape = 'u8[786432]{0}', space=vmem, size = 0xc0000, scoped, tag = 'input window, operand 1, single buffered']
    #allocation6 [shape = 's32[1]{0}', space=sflag, size = 0x4, scoped, tag = 'scoped memory for tpu_custom_call.1']
    #allocation7 [shape = 'u8[98304]{0}', space=vmem, size = 0x18000, scoped, tag = 'input window, operand 4, single buffered']
    #allocation8 [shape = 'u8[4096]{0}', space=vmem, size = 0x1000, scoped, tag = 'output window, operand 0, single buffered']
    #allocation9 [shape = 'u8[4096]{0}', space=vmem, size = 0x1000, scoped, tag = 'output window, operand 1, single buffered']
    #allocation10 [shape = 's32[1]{0}', space=sflag, size = 0x4, scoped, tag = 'scoped memory for tpu_custom_call.1']
    %13 = vsyncpa [#allocation3], 0
    %14 = vsyncpa [#allocation6], 0
    %15 = vsyncpa [#allocation4], 0
    %16 = vsyncpa [#allocation10], 0
    // Predicated region
    $region2: #{tpu_custom_call.1} parent=1 // pred_check
      _
    $region3: #{tpu_custom_call.1} parent=1 // pred_check_branch
      %18 = sbr.rel (0) target = $region5
    $region4: #{tpu_custom_call.1} parent=1 // pred_region
      %s20 = ssub.s32 512, 512
      %21 = vsyncadd [#allocation3], %s20
      %s23 = sshll.u32 [#allocation2], 4
      %s24 = int_to_ptr.vmem [resolvable:$true] %s23
      %26 = dma.hbm_to_vmem [thread:$0]  %s0, 512, %s24, [#allocation3]
    $region5: #{tpu_custom_call.1} parent=1 // pred_fallthru
      _
    // Predicated region
    $region6: #{tpu_custom_call.1} parent=1 // pred_check
      _
    $region7: #{tpu_custom_call.1} parent=1 // pred_check_branch
      %28 = sbr.rel (0) target = $region9
    $region8: #{tpu_custom_call.1} parent=1 // pred_region
      %s30 = ssub.s32 24576, 24576
      %31 = vsyncadd [#allocation6], %s30
      %s32 = sshll.u32 [#allocation5], 4
      %s33 = int_to_ptr.vmem [resolvable:$true] %s32
      %38 = dma.hbm_to_vmem [thread:$0]  %s1, 24576, %s33, [#allocation6], 192, 192, 12
    $region9: #{tpu_custom_call.1} parent=1 // pred_fallthru
      _
    // Predicated region
    $region10: #{tpu_custom_call.1} parent=1 // pred_check
      _
    $region11: #{tpu_custom_call.1} parent=1 // pred_check_branch
      %40 = sbr.rel (0) target = $region13
    $region12: #{tpu_custom_call.1} parent=1 // pred_region
      _
    $region13: #{tpu_custom_call.1} parent=1 // pred_fallthru
      _
    // Predicated region
    $region14: #{tpu_custom_call.1} parent=1 // pred_check
      _
    $region15: #{tpu_custom_call.1} parent=1 // pred_check_branch
      %42 = sbr.rel (0) target = $region17
    $region16: #{tpu_custom_call.1} parent=1 // pred_region
      _
    $region17: #{tpu_custom_call.1} parent=1 // pred_fallthru
      _
    // Predicated region
    $region18: #{tpu_custom_call.1} parent=1 // pred_check
      _
    $region19: #{tpu_custom_call.1} parent=1 // pred_check_branch
      %44 = sbr.rel (0) target = $region21
    $region20: #{tpu_custom_call.1} parent=1 // pred_region
      %s46 = ssub.s32 3072, 3072
      %47 = vsyncadd [#allocation6], %s46
      %s48 = sshll.u32 [#allocation7], 4
      %s49 = int_to_ptr.vmem [resolvable:$true] %s48
      %54 = dma.hbm_to_vmem [thread:$0]  %s4, 3072, %s49, [#allocation6], 64, 64, 4
    $region21: #{tpu_custom_call.1} parent=1 // pred_fallthru
      _
    // Predicated region
    $region22: #{tpu_custom_call.1} parent=1 // pred_check
      _
    $region23: #{tpu_custom_call.1} parent=1 // pred_check_branch
      %56 = sbr.rel (0) target = $region25
    $region24: #{tpu_custom_call.1} parent=1 // pred_region
      _
    $region25: #{tpu_custom_call.1} parent=1 // pred_fallthru
      _
    // Predicated region
    $region26: #{tpu_custom_call.1} parent=1 // pred_check
      _
    $region27: #{tpu_custom_call.1} parent=1 // pred_check_branch
      %58 = sbr.rel (0) target = $region29
    $region28: #{tpu_custom_call.1} parent=1 // pred_region
      %59 = dma.done [#allocation3], 512
    $region29: #{tpu_custom_call.1} parent=1 // pred_fallthru
      _
    // Predicated region
    $region30: #{tpu_custom_call.1} parent=1 // pred_check
      _
    $region31: #{tpu_custom_call.1} parent=1 // pred_check_branch
      %61 = sbr.rel (0) target = $region33
    $region32: #{tpu_custom_call.1} parent=1 // pred_region
      %62 = dma.done [#allocation6], 24576
    $region33: #{tpu_custom_call.1} parent=1 // pred_fallthru
      _
    // Predicated region
    $region34: #{tpu_custom_call.1} parent=1 // pred_check
      _
    $region35: #{tpu_custom_call.1} parent=1 // pred_check_branch
      %64 = sbr.rel (0) target = $region37
    $region36: #{tpu_custom_call.1} parent=1 // pred_region
      %65 = dma.done [#allocation6], 3072
    $region37: #{tpu_custom_call.1} parent=1 // pred_fallthru
      _
    %v67 = vld [vmem:[#allocation2] sm:$0xff]
    %v68 = vld [vmem:[#allocation2 + $0x8] sm:$0xff]
    %v69 = vld [vmem:[#allocation2 + $0x10] sm:$0xff]
    %v70 = vld [vmem:[#allocation2 + $0x18] sm:$0xff]
    %v71 = vld [vmem:[#allocation5] sm:$0xff]
    %v72 = vld [vmem:[#allocation5 + $0x8] sm:$0xf]
    %v73 = vld [vmem:[#allocation5 + $0xc] sm:$0xff]
    %v74 = vld [vmem:[#allocation5 + $0x14] sm:$0xf]
    %v75 = vld [vmem:[#allocation5 + $0x18] sm:$0xff]
    %v76 = vld [vmem:[#allocation5 + $0x20] sm:$0xf]
    %v77 = vld [vmem:[#allocation5 + $0x24] sm:$0xff]
    %v78 = vld [vmem:[#allocation5 + $0x2c] sm:$0xf]
    %v79 = vld [vmem:[#allocation5 + $0x30] sm:$0xff]
    %v80 = vld [vmem:[#allocation5 + $0x38] sm:$0xf]
    %v81 = vld [vmem:[#allocation5 + $0x3c] sm:$0xff]
    %v82 = vld [vmem:[#allocation5 + $0x44] sm:$0xf]
    %v83 = vld [vmem:[#allocation5 + $0x48] sm:$0xff]
    %v84 = vld [vmem:[#allocation5 + $0x50] sm:$0xf]
    %v85 = vld [vmem:[#allocation5 + $0x54] sm:$0xff]
    %v86 = vld [vmem:[#allocation5 + $0x5c] sm:$0xf]
    %v87 = vld [vmem:[#allocation5 + $0x60] sm:$0xff]
    %v88 = vld [vmem:[#allocation5 + $0x68] sm:$0xf]
    %v89 = vld [vmem:[#allocation5 + $0x6c] sm:$0xff]
    %v90 = vld [vmem:[#allocation5 + $0x74] sm:$0xf]
    %v91 = vld [vmem:[#allocation5 + $0x78] sm:$0xff]
    %v92 = vld [vmem:[#allocation5 + $0x80] sm:$0xf]
    %v93 = vld [vmem:[#allocation5 + $0x84] sm:$0xff]
    %v94 = vld [vmem:[#allocation5 + $0x8c] sm:$0xf]
    %v95 = vld [vmem:[#allocation5 + $0x90] sm:$0xff]
    %v96 = vld [vmem:[#allocation5 + $0x98] sm:$0xf]
    %v97 = vld [vmem:[#allocation5 + $0x9c] sm:$0xff]
    %v98 = vld [vmem:[#allocation5 + $0xa4] sm:$0xf]
    %v99 = vld [vmem:[#allocation5 + $0xa8] sm:$0xff]
    %v100 = vld [vmem:[#allocation5 + $0xb0] sm:$0xf]
    %v101 = vld [vmem:[#allocation5 + $0xb4] sm:$0xff]
    %v102 = vld [vmem:[#allocation5 + $0xbc] sm:$0xf]
    %v103 = vld [vmem:[#allocation5 + $0xc0] sm:$0xff]
    %v104 = vld [vmem:[#allocation5 + $0xc8] sm:$0xf]
    %v105 = vld [vmem:[#allocation5 + $0xcc] sm:$0xff]
    %v106 = vld [vmem:[#allocation5 + $0xd4] sm:$0xf]
    %v107 = vld [vmem:[#allocation5 + $0xd8] sm:$0xff]
    %v108 = vld [vmem:[#allocation5 + $0xe0] sm:$0xf]
    %v109 = vld [vmem:[#allocation5 + $0xe4] sm:$0xff]
    %v110 = vld [vmem:[#allocation5 + $0xec] sm:$0xf]
    %v111 = vld [vmem:[#allocation5 + $0xf0] sm:$0xff]
    %v112 = vld [vmem:[#allocation5 + $0xf8] sm:$0xf]
    %v113 = vld [vmem:[#allocation5 + $0xfc] sm:$0xff]
    %v114 = vld [vmem:[#allocation5 + $0x104] sm:$0xf]
    %v115 = vld [vmem:[#allocation5 + $0x108] sm:$0xff]
    %v116 = vld [vmem:[#allocation5 + $0x110] sm:$0xf]
    %v117 = vld [vmem:[#allocation5 + $0x114] sm:$0xff]
    %v118 = vld [vmem:[#allocation5 + $0x11c] sm:$0xf]
    %v119 = vld [vmem:[#allocation5 + $0x120] sm:$0xff]
    %v120 = vld [vmem:[#allocation5 + $0x128] sm:$0xf]
    %v121 = vld [vmem:[#allocation5 + $0x12c] sm:$0xff]
    %v122 = vld [vmem:[#allocation5 + $0x134] sm:$0xf]
    %v123 = vld [vmem:[#allocation5 + $0x138] sm:$0xff]
    %v124 = vld [vmem:[#allocation5 + $0x140] sm:$0xf]
    %v125 = vld [vmem:[#allocation5 + $0x144] sm:$0xff]
    %v126 = vld [vmem:[#allocation5 + $0x14c] sm:$0xf]
    %v127 = vld [vmem:[#allocation5 + $0x150] sm:$0xff]
    %v128 = vld [vmem:[#allocation5 + $0x158] sm:$0xf]
    %v129 = vld [vmem:[#allocation5 + $0x15c] sm:$0xff]
    %v130 = vld [vmem:[#allocation5 + $0x164] sm:$0xf]
    %v131 = vld [vmem:[#allocation5 + $0x168] sm:$0xff]
    %v132 = vld [vmem:[#allocation5 + $0x170] sm:$0xf]
    %v133 = vld [vmem:[#allocation5 + $0x174] sm:$0xff]
    %v134 = vld [vmem:[#allocation5 + $0x17c] sm:$0xf]
    %v135 = vld [vmem:[#allocation5 + $0x180] sm:$0xff]
    %v136 = vld [vmem:[#allocation5 + $0x188] sm:$0xf]
    %v137 = vld [vmem:[#allocation5 + $0x18c] sm:$0xff]
    %v138 = vld [vmem:[#allocation5 + $0x194] sm:$0xf]
    %v139 = vld [vmem:[#allocation5 + $0x198] sm:$0xff]
    %v140 = vld [vmem:[#allocation5 + $0x1a0] sm:$0xf]
    %v141 = vld [vmem:[#allocation5 + $0x1a4] sm:$0xff]
    %v142 = vld [vmem:[#allocation5 + $0x1ac] sm:$0xf]
    %v143 = vld [vmem:[#allocation5 + $0x1b0] sm:$0xff]
    %v144 = vld [vmem:[#allocation5 + $0x1b8] sm:$0xf]
    %v145 = vld [vmem:[#allocation5 + $0x1bc] sm:$0xff]
    %v146 = vld [vmem:[#allocation5 + $0x1c4] sm:$0xf]
    %v147 = vld [vmem:[#allocation5 + $0x1c8] sm:$0xff]
    %v148 = vld [vmem:[#allocation5 + $0x1d0] sm:$0xf]
    %v149 = vld [vmem:[#allocation5 + $0x1d4] sm:$0xff]
    %v150 = vld [vmem:[#allocation5 + $0x1dc] sm:$0xf]
    %v151 = vld [vmem:[#allocation5 + $0x1e0] sm:$0xff]
    %v152 = vld [vmem:[#allocation5 + $0x1e8] sm:$0xf]
    %v153 = vld [vmem:[#allocation5 + $0x1ec] sm:$0xff]
    %v154 = vld [vmem:[#allocation5 + $0x1f4] sm:$0xf]
    %v155 = vld [vmem:[#allocation5 + $0x1f8] sm:$0xff]
    %v156 = vld [vmem:[#allocation5 + $0x200] sm:$0xf]
    %v157 = vld [vmem:[#allocation5 + $0x204] sm:$0xff]
    %v158 = vld [vmem:[#allocation5 + $0x20c] sm:$0xf]
    %v159 = vld [vmem:[#allocation5 + $0x210] sm:$0xff]
    %v160 = vld [vmem:[#allocation5 + $0x218] sm:$0xf]
    %v161 = vld [vmem:[#allocation5 + $0x21c] sm:$0xff]
    %v162 = vld [vmem:[#allocation5 + $0x224] sm:$0xf]
    %v163 = vld [vmem:[#allocation5 + $0x228] sm:$0xff]
    %v164 = vld [vmem:[#allocation5 + $0x230] sm:$0xf]
    %v165 = vld [vmem:[#allocation5 + $0x234] sm:$0xff]
    %v166 = vld [vmem:[#allocation5 + $0x23c] sm:$0xf]
    %v167 = vld [vmem:[#allocation5 + $0x240] sm:$0xff]
    %v168 = vld [vmem:[#allocation5 + $0x248] sm:$0xf]
    %v169 = vld [vmem:[#allocation5 + $0x24c] sm:$0xff]
    %v170 = vld [vmem:[#allocation5 + $0x254] sm:$0xf]
    %v171 = vld [vmem:[#allocation5 + $0x258] sm:$0xff]
    %v172 = vld [vmem:[#allocation5 + $0x260] sm:$0xf]
    %v173 = vld [vmem:[#allocation5 + $0x264] sm:$0xff]
    %v174 = vld [vmem:[#allocation5 + $0x26c] sm:$0xf]
    %v175 = vld [vmem:[#allocation5 + $0x270] sm:$0xff]
    %v176 = vld [vmem:[#allocation5 + $0x278] sm:$0xf]
    %v177 = vld [vmem:[#allocation5 + $0x27c] sm:$0xff]
    %v178 = vld [vmem:[#allocation5 + $0x284] sm:$0xf]
    %v179 = vld [vmem:[#allocation5 + $0x288] sm:$0xff]
    %v180 = vld [vmem:[#allocation5 + $0x290] sm:$0xf]
    %v181 = vld [vmem:[#allocation5 + $0x294] sm:$0xff]
    %v182 = vld [vmem:[#allocation5 + $0x29c] sm:$0xf]
    %v183 = vld [vmem:[#allocation5 + $0x2a0] sm:$0xff]
    %v184 = vld [vmem:[#allocation5 + $0x2a8] sm:$0xf]
    %v185 = vld [vmem:[#allocation5 + $0x2ac] sm:$0xff]
    %v186 = vld [vmem:[#allocation5 + $0x2b4] sm:$0xf]
    %v187 = vld [vmem:[#allocation5 + $0x2b8] sm:$0xff]
    %v188 = vld [vmem:[#allocation5 + $0x2c0] sm:$0xf]
    %v189 = vld [vmem:[#allocation5 + $0x2c4] sm:$0xff]
    %v190 = vld [vmem:[#allocation5 + $0x2cc] sm:$0xf]
    %v191 = vld [vmem:[#allocation5 + $0x2d0] sm:$0xff]
    %v192 = vld [vmem:[#allocation5 + $0x2d8] sm:$0xf]
    %v193 = vld [vmem:[#allocation5 + $0x2dc] sm:$0xff]
    %v194 = vld [vmem:[#allocation5 + $0x2e4] sm:$0xf]
    %v195 = vld [vmem:[#allocation5 + $0x2e8] sm:$0xff]
    %v196 = vld [vmem:[#allocation5 + $0x2f0] sm:$0xf]
    %v197 = vld [vmem:[#allocation5 + $0x2f4] sm:$0xff]
    %v198 = vld [vmem:[#allocation5 + $0x2fc] sm:$0xf]
    %v199 = vld [vmem:[#allocation5 + $0x300] sm:$0xff]
    %v200 = vld [vmem:[#allocation5 + $0x308] sm:$0xf]
    %v201 = vld [vmem:[#allocation5 + $0x30c] sm:$0xff]
    %v202 = vld [vmem:[#allocation5 + $0x314] sm:$0xf]
    %v203 = vld [vmem:[#allocation5 + $0x318] sm:$0xff]
    %v204 = vld [vmem:[#allocation5 + $0x320] sm:$0xf]
    %v205 = vld [vmem:[#allocation5 + $0x324] sm:$0xff]
    %v206 = vld [vmem:[#allocation5 + $0x32c] sm:$0xf]
    %v207 = vld [vmem:[#allocation5 + $0x330] sm:$0xff]
    %v208 = vld [vmem:[#allocation5 + $0x338] sm:$0xf]
    %v209 = vld [vmem:[#allocation5 + $0x33c] sm:$0xff]
    %v210 = vld [vmem:[#allocation5 + $0x344] sm:$0xf]
    %v211 = vld [vmem:[#allocation5 + $0x348] sm:$0xff]
    %v212 = vld [vmem:[#allocation5 + $0x350] sm:$0xf]
    %v213 = vld [vmem:[#allocation5 + $0x354] sm:$0xff]
    %v214 = vld [vmem:[#allocation5 + $0x35c] sm:$0xf]
    %v215 = vld [vmem:[#allocation5 + $0x360] sm:$0xff]
    %v216 = vld [vmem:[#allocation5 + $0x368] sm:$0xf]
    %v217 = vld [vmem:[#allocation5 + $0x36c] sm:$0xff]
    %v218 = vld [vmem:[#allocation5 + $0x374] sm:$0xf]
    %v219 = vld [vmem:[#allocation5 + $0x378] sm:$0xff]
    %v220 = vld [vmem:[#allocation5 + $0x380] sm:$0xf]
    %v221 = vld [vmem:[#allocation5 + $0x384] sm:$0xff]
    %v222 = vld [vmem:[#allocation5 + $0x38c] sm:$0xf]
    %v223 = vld [vmem:[#allocation5 + $0x390] sm:$0xff]
    %v224 = vld [vmem:[#allocation5 + $0x398] sm:$0xf]
    %v225 = vld [vmem:[#allocation5 + $0x39c] sm:$0xff]
    %v226 = vld [vmem:[#allocation5 + $0x3a4] sm:$0xf]
    %v227 = vld [vmem:[#allocation5 + $0x3a8] sm:$0xff]
    %v228 = vld [vmem:[#allocation5 + $0x3b0] sm:$0xf]
    %v229 = vld [vmem:[#allocation5 + $0x3b4] sm:$0xff]
    %v230 = vld [vmem:[#allocation5 + $0x3bc] sm:$0xf]
    %v231 = vld [vmem:[#allocation5 + $0x3c0] sm:$0xff]
    %v232 = vld [vmem:[#allocation5 + $0x3c8] sm:$0xf]
    %v233 = vld [vmem:[#allocation5 + $0x3cc] sm:$0xff]
    %v234 = vld [vmem:[#allocation5 + $0x3d4] sm:$0xf]
    %v235 = vld [vmem:[#allocation5 + $0x3d8] sm:$0xff]
    %v236 = vld [vmem:[#allocation5 + $0x3e0] sm:$0xf]
    %v237 = vld [vmem:[#allocation5 + $0x3e4] sm:$0xff]
    %v238 = vld [vmem:[#allocation5 + $0x3ec] sm:$0xf]
    %v239 = vld [vmem:[#allocation5 + $0x3f0] sm:$0xff]
    %v240 = vld [vmem:[#allocation5 + $0x3f8] sm:$0xf]
    %v241 = vld [vmem:[#allocation5 + $0x3fc] sm:$0xff]
    %v242 = vld [vmem:[#allocation5 + $0x404] sm:$0xf]
    %v243 = vld [vmem:[#allocation5 + $0x408] sm:$0xff]
    %v244 = vld [vmem:[#allocation5 + $0x410] sm:$0xf]
    %v245 = vld [vmem:[#allocation5 + $0x414] sm:$0xff]
    %v246 = vld [vmem:[#allocation5 + $0x41c] sm:$0xf]
    %v247 = vld [vmem:[#allocation5 + $0x420] sm:$0xff]
    %v248 = vld [vmem:[#allocation5 + $0x428] sm:$0xf]
    %v249 = vld [vmem:[#allocation5 + $0x42c] sm:$0xff]
    %v250 = vld [vmem:[#allocation5 + $0x434] sm:$0xf]
    %v251 = vld [vmem:[#allocation5 + $0x438] sm:$0xff]
    %v252 = vld [vmem:[#allocation5 + $0x440] sm:$0xf]
    %v253 = vld [vmem:[#allocation5 + $0x444] sm:$0xff]
    %v254 = vld [vmem:[#allocation5 + $0x44c] sm:$0xf]
    %v255 = vld [vmem:[#allocation5 + $0x450] sm:$0xff]
    %v256 = vld [vmem:[#allocation5 + $0x458] sm:$0xf]
    %v257 = vld [vmem:[#allocation5 + $0x45c] sm:$0xff]
    %v258 = vld [vmem:[#allocation5 + $0x464] sm:$0xf]
    %v259 = vld [vmem:[#allocation5 + $0x468] sm:$0xff]
    %v260 = vld [vmem:[#allocation5 + $0x470] sm:$0xf]
    %v261 = vld [vmem:[#allocation5 + $0x474] sm:$0xff]
    %v262 = vld [vmem:[#allocation5 + $0x47c] sm:$0xf]
    %v263 = vld [vmem:[#allocation5 + $0x480] sm:$0xff]
    %v264 = vld [vmem:[#allocation5 + $0x488] sm:$0xf]
    %v265 = vld [vmem:[#allocation5 + $0x48c] sm:$0xff]
    %v266 = vld [vmem:[#allocation5 + $0x494] sm:$0xf]
    %v267 = vld [vmem:[#allocation5 + $0x498] sm:$0xff]
    %v268 = vld [vmem:[#allocation5 + $0x4a0] sm:$0xf]
    %v269 = vld [vmem:[#allocation5 + $0x4a4] sm:$0xff]
    %v270 = vld [vmem:[#allocation5 + $0x4ac] sm:$0xf]
    %v271 = vld [vmem:[#allocation5 + $0x4b0] sm:$0xff]
    %v272 = vld [vmem:[#allocation5 + $0x4b8] sm:$0xf]
    %v273 = vld [vmem:[#allocation5 + $0x4bc] sm:$0xff]
    %v274 = vld [vmem:[#allocation5 + $0x4c4] sm:$0xf]
    %v275 = vld [vmem:[#allocation5 + $0x4c8] sm:$0xff]
    %v276 = vld [vmem:[#allocation5 + $0x4d0] sm:$0xf]
    %v277 = vld [vmem:[#allocation5 + $0x4d4] sm:$0xff]
    %v278 = vld [vmem:[#allocation5 + $0x4dc] sm:$0xf]
    %v279 = vld [vmem:[#allocation5 + $0x4e0] sm:$0xff]
    %v280 = vld [vmem:[#allocation5 + $0x4e8] sm:$0xf]
    %v281 = vld [vmem:[#allocation5 + $0x4ec] sm:$0xff]
    %v282 = vld [vmem:[#allocation5 + $0x4f4] sm:$0xf]
    %v283 = vld [vmem:[#allocation5 + $0x4f8] sm:$0xff]
    %v284 = vld [vmem:[#allocation5 + $0x500] sm:$0xf]
    %v285 = vld [vmem:[#allocation5 + $0x504] sm:$0xff]
    %v286 = vld [vmem:[#allocation5 + $0x50c] sm:$0xf]
    %v287 = vld [vmem:[#allocation5 + $0x510] sm:$0xff]
    %v288 = vld [vmem:[#allocation5 + $0x518] sm:$0xf]
    %v289 = vld [vmem:[#allocation5 + $0x51c] sm:$0xff]
    %v290 = vld [vmem:[#allocation5 + $0x524] sm:$0xf]
    %v291 = vld [vmem:[#allocation5 + $0x528] sm:$0xff]
    %v292 = vld [vmem:[#allocation5 + $0x530] sm:$0xf]
    %v293 = vld [vmem:[#allocation5 + $0x534] sm:$0xff]
    %v294 = vld [vmem:[#allocation5 + $0x53c] sm:$0xf]
    %v295 = vld [vmem:[#allocation5 + $0x540] sm:$0xff]
    %v296 = vld [vmem:[#allocation5 + $0x548] sm:$0xf]
    %v297 = vld [vmem:[#allocation5 + $0x54c] sm:$0xff]
    %v298 = vld [vmem:[#allocation5 + $0x554] sm:$0xf]
    %v299 = vld [vmem:[#allocation5 + $0x558] sm:$0xff]
    %v300 = vld [vmem:[#allocation5 + $0x560] sm:$0xf]
    %v301 = vld [vmem:[#allocation5 + $0x564] sm:$0xff]
    %v302 = vld [vmem:[#allocation5 + $0x56c] sm:$0xf]
    %v303 = vld [vmem:[#allocation5 + $0x570] sm:$0xff]
    %v304 = vld [vmem:[#allocation5 + $0x578] sm:$0xf]
    %v305 = vld [vmem:[#allocation5 + $0x57c] sm:$0xff]
    %v306 = vld [vmem:[#allocation5 + $0x584] sm:$0xf]
    %v307 = vld [vmem:[#allocation5 + $0x588] sm:$0xff]
    %v308 = vld [vmem:[#allocation5 + $0x590] sm:$0xf]
    %v309 = vld [vmem:[#allocation5 + $0x594] sm:$0xff]
    %v310 = vld [vmem:[#allocation5 + $0x59c] sm:$0xf]
    %v311 = vld [vmem:[#allocation5 + $0x5a0] sm:$0xff]
    %v312 = vld [vmem:[#allocation5 + $0x5a8] sm:$0xf]
    %v313 = vld [vmem:[#allocation5 + $0x5ac] sm:$0xff]
    %v314 = vld [vmem:[#allocation5 + $0x5b4] sm:$0xf]
    %v315 = vld [vmem:[#allocation5 + $0x5b8] sm:$0xff]
    %v316 = vld [vmem:[#allocation5 + $0x5c0] sm:$0xf]
    %v317 = vld [vmem:[#allocation5 + $0x5c4] sm:$0xff]
    %v318 = vld [vmem:[#allocation5 + $0x5cc] sm:$0xf]
    %v319 = vld [vmem:[#allocation5 + $0x5d0] sm:$0xff]
    %v320 = vld [vmem:[#allocation5 + $0x5d8] sm:$0xf]
    %v321 = vld [vmem:[#allocation5 + $0x5dc] sm:$0xff]
    %v322 = vld [vmem:[#allocation5 + $0x5e4] sm:$0xf]
    %v323 = vld [vmem:[#allocation5 + $0x5e8] sm:$0xff]
    %v324 = vld [vmem:[#allocation5 + $0x5f0] sm:$0xf]
    %v325 = vld [vmem:[#allocation5 + $0x5f4] sm:$0xff]
    %v326 = vld [vmem:[#allocation5 + $0x5fc] sm:$0xf]
    %v327 = vld [vmem:[%s2] sm:$0x7]
    %v329 = vlaneseq
    %v330 = vshrl.u32 %v329, 7
    %v331 = vsub.s32 0, %v330
    %v332 = vrot.slane %v327, %v331
    %v333 = vlaneseq
    %v334 = vshrl.u32 %v333, 7
    %v335 = vsub.s32 1, %v334
    %v336 = vrot.slane %v327, %v335
    %v337 = vlaneseq
    %v338 = vshrl.u32 %v337, 7
    %v339 = vsub.s32 2, %v338
    %v340 = vrot.slane %v327, %v339
    %v348 = vunpack.c.l.b16 %v67
    %v349 = vunpack.c.h.b16 %v67
    %v350 = vunpack.c.l.b16 %v68
    %v351 = vunpack.c.h.b16 %v68
    %v352 = vunpack.c.l.b16 %v69
    %v353 = vunpack.c.h.b16 %v69
    %v354 = vunpack.c.l.b16 %v70
    %v355 = vunpack.c.h.b16 %v70
    %v356 = vpack.c.b16 %v348, %v348
    %v357 = vpack.c.b16 %v349, %v349
    %v358 = vpack.c.b16 %v350, %v350
    %v359 = vpack.c.b16 %v351, %v351
    %v360 = vpack.c.b16 %v352, %v352
    %v361 = vpack.c.b16 %v353, %v353
    %v362 = vpack.c.b16 %v354, %v354
    %v363 = vpack.c.b16 %v355, %v355
    %v628 = vunpack.c.l.b16 %v71
    %v629 = vunpack.c.h.b16 %v71
    %v630 = vunpack.c.l.b16 %v72
    %v631 = vunpack.c.l.b16 %v73
    %v632 = vunpack.c.h.b16 %v73
    %v633 = vunpack.c.l.b16 %v74
    %v634 = vunpack.c.l.b16 %v75
    %v635 = vunpack.c.h.b16 %v75
    %v636 = vunpack.c.l.b16 %v76
    %v637 = vunpack.c.l.b16 %v77
    %v638 = vunpack.c.h.b16 %v77
    %v639 = vunpack.c.l.b16 %v78
    %v640 = vunpack.c.l.b16 %v79
    %v641 = vunpack.c.h.b16 %v79
    %v642 = vunpack.c.l.b16 %v80
    %v643 = vunpack.c.l.b16 %v81
    %v644 = vunpack.c.h.b16 %v81
    %v645 = vunpack.c.l.b16 %v82
    %v646 = vunpack.c.l.b16 %v83
    %v647 = vunpack.c.h.b16 %v83
    %v648 = vunpack.c.l.b16 %v84
    %v649 = vunpack.c.l.b16 %v85
    %v650 = vunpack.c.h.b16 %v85
    %v651 = vunpack.c.l.b16 %v86
    %v652 = vunpack.c.l.b16 %v87
    %v653 = vunpack.c.h.b16 %v87
    %v654 = vunpack.c.l.b16 %v88
    %v655 = vunpack.c.l.b16 %v89
    %v656 = vunpack.c.h.b16 %v89
    %v657 = vunpack.c.l.b16 %v90
    %v658 = vunpack.c.l.b16 %v91
    %v659 = vunpack.c.h.b16 %v91
    %v660 = vunpack.c.l.b16 %v92
    %v661 = vunpack.c.l.b16 %v93
    %v662 = vunpack.c.h.b16 %v93
    %v663 = vunpack.c.l.b16 %v94
    %v664 = vunpack.c.l.b16 %v95
    %v665 = vunpack.c.h.b16 %v95
    %v666 = vunpack.c.l.b16 %v96
    %v667 = vunpack.c.l.b16 %v97
    %v668 = vunpack.c.h.b16 %v97
    %v669 = vunpack.c.l.b16 %v98
    %v670 = vunpack.c.l.b16 %v99
    %v671 = vunpack.c.h.b16 %v99
    %v672 = vunpack.c.l.b16 %v100
    %v673 = vunpack.c.l.b16 %v101
    %v674 = vunpack.c.h.b16 %v101
    %v675 = vunpack.c.l.b16 %v102
    %v676 = vunpack.c.l.b16 %v103
    %v677 = vunpack.c.h.b16 %v103
    %v678 = vunpack.c.l.b16 %v104
    %v679 = vunpack.c.l.b16 %v105
    %v680 = vunpack.c.h.b16 %v105
    %v681 = vunpack.c.l.b16 %v106
    %v682 = vunpack.c.l.b16 %v107
    %v683 = vunpack.c.h.b16 %v107
    %v684 = vunpack.c.l.b16 %v108
    %v685 = vunpack.c.l.b16 %v109
    %v686 = vunpack.c.h.b16 %v109
    %v687 = vunpack.c.l.b16 %v110
    %v688 = vunpack.c.l.b16 %v111
    %v689 = vunpack.c.h.b16 %v111
    %v690 = vunpack.c.l.b16 %v112
    %v691 = vunpack.c.l.b16 %v113
    %v692 = vunpack.c.h.b16 %v113
    %v693 = vunpack.c.l.b16 %v114
    %v694 = vunpack.c.l.b16 %v115
    %v695 = vunpack.c.h.b16 %v115
    %v696 = vunpack.c.l.b16 %v116
    %v697 = vunpack.c.l.b16 %v117
    %v698 = vunpack.c.h.b16 %v117
    %v699 = vunpack.c.l.b16 %v118
    %v700 = vunpack.c.l.b16 %v119
    %v701 = vunpack.c.h.b16 %v119
    %v702 = vunpack.c.l.b16 %v120
    %v703 = vunpack.c.l.b16 %v121
    %v704 = vunpack.c.h.b16 %v121
    %v705 = vunpack.c.l.b16 %v122
    %v706 = vunpack.c.l.b16 %v123
    %v707 = vunpack.c.h.b16 %v123
    %v708 = vunpack.c.l.b16 %v124
    %v709 = vunpack.c.l.b16 %v125
    %v710 = vunpack.c.h.b16 %v125
    %v711 = vunpack.c.l.b16 %v126
    %v712 = vunpack.c.l.b16 %v127
    %v713 = vunpack.c.h.b16 %v127
    %v714 = vunpack.c.l.b16 %v128
    %v715 = vunpack.c.l.b16 %v129
    %v716 = vunpack.c.h.b16 %v129
    %v717 = vunpack.c.l.b16 %v130
    %v718 = vunpack.c.l.b16 %v131
    %v719 = vunpack.c.h.b16 %v131
    %v720 = vunpack.c.l.b16 %v132
    %v721 = vunpack.c.l.b16 %v133
    %v722 = vunpack.c.h.b16 %v133
    %v723 = vunpack.c.l.b16 %v134
    %v724 = vunpack.c.l.b16 %v135
    %v725 = vunpack.c.h.b16 %v135
    %v726 = vunpack.c.l.b16 %v136
    %v727 = vunpack.c.l.b16 %v137
    %v728 = vunpack.c.h.b16 %v137
    %v729 = vunpack.c.l.b16 %v138
    %v730 = vunpack.c.l.b16 %v139
    %v731 = vunpack.c.h.b16 %v139
    %v732 = vunpack.c.l.b16 %v140
    %v733 = vunpack.c.l.b16 %v141
    %v734 = vunpack.c.h.b16 %v141
    %v735 = vunpack.c.l.b16 %v142
    %v736 = vunpack.c.l.b16 %v143
    %v737 = vunpack.c.h.b16 %v143
    %v738 = vunpack.c.l.b16 %v144
    %v739 = vunpack.c.l.b16 %v145
    %v740 = vunpack.c.h.b16 %v145
    %v741 = vunpack.c.l.b16 %v146
    %v742 = vunpack.c.l.b16 %v147
    %v743 = vunpack.c.h.b16 %v147
    %v744 = vunpack.c.l.b16 %v148
    %v745 = vunpack.c.l.b16 %v149
    %v746 = vunpack.c.h.b16 %v149
    %v747 = vunpack.c.l.b16 %v150
    %v748 = vunpack.c.l.b16 %v151
    %v749 = vunpack.c.h.b16 %v151
    %v750 = vunpack.c.l.b16 %v152
    %v751 = vunpack.c.l.b16 %v153
    %v752 = vunpack.c.h.b16 %v153
    %v753 = vunpack.c.l.b16 %v154
    %v754 = vunpack.c.l.b16 %v155
    %v755 = vunpack.c.h.b16 %v155
    %v756 = vunpack.c.l.b16 %v156
    %v757 = vunpack.c.l.b16 %v157
    %v758 = vunpack.c.h.b16 %v157
    %v759 = vunpack.c.l.b16 %v158
    %v760 = vunpack.c.l.b16 %v159
    %v761 = vunpack.c.h.b16 %v159
    %v762 = vunpack.c.l.b16 %v160
    %v763 = vunpack.c.l.b16 %v161
    %v764 = vunpack.c.h.b16 %v161
    %v765 = vunpack.c.l.b16 %v162
    %v766 = vunpack.c.l.b16 %v163
    %v767 = vunpack.c.h.b16 %v163
    %v768 = vunpack.c.l.b16 %v164
    %v769 = vunpack.c.l.b16 %v165
    %v770 = vunpack.c.h.b16 %v165
    %v771 = vunpack.c.l.b16 %v166
    %v772 = vunpack.c.l.b16 %v167
    %v773 = vunpack.c.h.b16 %v167
    %v774 = vunpack.c.l.b16 %v168
    %v775 = vunpack.c.l.b16 %v169
    %v776 = vunpack.c.h.b16 %v169
    %v777 = vunpack.c.l.b16 %v170
    %v778 = vunpack.c.l.b16 %v171
    %v779 = vunpack.c.h.b16 %v171
    %v780 = vunpack.c.l.b16 %v172
    %v781 = vunpack.c.l.b16 %v173
    %v782 = vunpack.c.h.b16 %v173
    %v783 = vunpack.c.l.b16 %v174
    %v784 = vunpack.c.l.b16 %v175
    %v785 = vunpack.c.h.b16 %v175
    %v786 = vunpack.c.l.b16 %v176
    %v787 = vunpack.c.l.b16 %v177
    %v788 = vunpack.c.h.b16 %v177
    %v789 = vunpack.c.l.b16 %v178
    %v790 = vunpack.c.l.b16 %v179
    %v791 = vunpack.c.h.b16 %v179
    %v792 = vunpack.c.l.b16 %v180
    %v793 = vunpack.c.l.b16 %v181
    %v794 = vunpack.c.h.b16 %v181
    %v795 = vunpack.c.l.b16 %v182
    %v796 = vunpack.c.l.b16 %v183
    %v797 = vunpack.c.h.b16 %v183
    %v798 = vunpack.c.l.b16 %v184
    %v799 = vunpack.c.l.b16 %v185
    %v800 = vunpack.c.h.b16 %v185
    %v801 = vunpack.c.l.b16 %v186
    %v802 = vunpack.c.l.b16 %v187
    %v803 = vunpack.c.h.b16 %v187
    %v804 = vunpack.c.l.b16 %v188
    %v805 = vunpack.c.l.b16 %v189
    %v806 = vunpack.c.h.b16 %v189
    %v807 = vunpack.c.l.b16 %v190
    %v808 = vunpack.c.l.b16 %v191
    %v809 = vunpack.c.h.b16 %v191
    %v810 = vunpack.c.l.b16 %v192
    %v811 = vunpack.c.l.b16 %v193
    %v812 = vunpack.c.h.b16 %v193
    %v813 = vunpack.c.l.b16 %v194
    %v814 = vunpack.c.l.b16 %v195
    %v815 = vunpack.c.h.b16 %v195
    %v816 = vunpack.c.l.b16 %v196
    %v817 = vunpack.c.l.b16 %v197
    %v818 = vunpack.c.h.b16 %v197
    %v819 = vunpack.c.l.b16 %v198
    %v820 = vunpack.c.l.b16 %v199
    %v821 = vunpack.c.h.b16 %v199
    %v822 = vunpack.c.l.b16 %v200
    %v823 = vunpack.c.l.b16 %v201
    %v824 = vunpack.c.h.b16 %v201
    %v825 = vunpack.c.l.b16 %v202
    %v826 = vunpack.c.l.b16 %v203
    %v827 = vunpack.c.h.b16 %v203
    %v828 = vunpack.c.l.b16 %v204
    %v829 = vunpack.c.l.b16 %v205
    %v830 = vunpack.c.h.b16 %v205
    %v831 = vunpack.c.l.b16 %v206
    %v832 = vunpack.c.l.b16 %v207
    %v833 = vunpack.c.h.b16 %v207
    %v834 = vunpack.c.l.b16 %v208
    %v835 = vunpack.c.l.b16 %v209
    %v836 = vunpack.c.h.b16 %v209
    %v837 = vunpack.c.l.b16 %v210
    %v838 = vunpack.c.l.b16 %v211
    %v839 = vunpack.c.h.b16 %v211
    %v840 = vunpack.c.l.b16 %v212
    %v841 = vunpack.c.l.b16 %v213
    %v842 = vunpack.c.h.b16 %v213
    %v843 = vunpack.c.l.b16 %v214
    %v844 = vunpack.c.l.b16 %v215
    %v845 = vunpack.c.h.b16 %v215
    %v846 = vunpack.c.l.b16 %v216
    %v847 = vunpack.c.l.b16 %v217
    %v848 = vunpack.c.h.b16 %v217
    %v849 = vunpack.c.l.b16 %v218
    %v850 = vunpack.c.l.b16 %v219
    %v851 = vunpack.c.h.b16 %v219
    %v852 = vunpack.c.l.b16 %v220
    %v853 = vunpack.c.l.b16 %v221
    %v854 = vunpack.c.h.b16 %v221
    %v855 = vunpack.c.l.b16 %v222
    %v856 = vunpack.c.l.b16 %v223
    %v857 = vunpack.c.h.b16 %v223
    %v858 = vunpack.c.l.b16 %v224
    %v859 = vunpack.c.l.b16 %v225
    %v860 = vunpack.c.h.b16 %v225
    %v861 = vunpack.c.l.b16 %v226
    %v862 = vunpack.c.l.b16 %v227
    %v863 = vunpack.c.h.b16 %v227
    %v864 = vunpack.c.l.b16 %v228
    %v865 = vunpack.c.l.b16 %v229
    %v866 = vunpack.c.h.b16 %v229
    %v867 = vunpack.c.l.b16 %v230
    %v868 = vunpack.c.l.b16 %v231
    %v869 = vunpack.c.h.b16 %v231
    %v870 = vunpack.c.l.b16 %v232
    %v871 = vunpack.c.l.b16 %v233
    %v872 = vunpack.c.h.b16 %v233
    %v873 = vunpack.c.l.b16 %v234
    %v874 = vunpack.c.l.b16 %v235
    %v875 = vunpack.c.h.b16 %v235
    %v876 = vunpack.c.l.b16 %v236
    %v877 = vunpack.c.l.b16 %v237
    %v878 = vunpack.c.h.b16 %v237
    %v879 = vunpack.c.l.b16 %v238
    %v880 = vunpack.c.l.b16 %v239
    %v881 = vunpack.c.h.b16 %v239
    %v882 = vunpack.c.l.b16 %v240
    %v883 = vunpack.c.l.b16 %v241
    %v884 = vunpack.c.h.b16 %v241
    %v885 = vunpack.c.l.b16 %v242
    %v886 = vunpack.c.l.b16 %v243
    %v887 = vunpack.c.h.b16 %v243
    %v888 = vunpack.c.l.b16 %v244
    %v889 = vunpack.c.l.b16 %v245
    %v890 = vunpack.c.h.b16 %v245
    %v891 = vunpack.c.l.b16 %v246
    %v892 = vunpack.c.l.b16 %v247
    %v893 = vunpack.c.h.b16 %v247
    %v894 = vunpack.c.l.b16 %v248
    %v895 = vunpack.c.l.b16 %v249
    %v896 = vunpack.c.h.b16 %v249
    %v897 = vunpack.c.l.b16 %v250
    %v898 = vunpack.c.l.b16 %v251
    %v899 = vunpack.c.h.b16 %v251
    %v900 = vunpack.c.l.b16 %v252
    %v901 = vunpack.c.l.b16 %v253
    %v902 = vunpack.c.h.b16 %v253
    %v903 = vunpack.c.l.b16 %v254
    %v904 = vunpack.c.l.b16 %v255
    %v905 = vunpack.c.h.b16 %v255
    %v906 = vunpack.c.l.b16 %v256
    %v907 = vunpack.c.l.b16 %v257
    %v908 = vunpack.c.h.b16 %v257
    %v909 = vunpack.c.l.b16 %v258
    %v910 = vunpack.c.l.b16 %v259
    %v911 = vunpack.c.h.b16 %v259
    %v912 = vunpack.c.l.b16 %v260
    %v913 = vunpack.c.l.b16 %v261
    %v914 = vunpack.c.h.b16 %v261
    %v915 = vunpack.c.l.b16 %v262
    %v916 = vunpack.c.l.b16 %v263
    %v917 = vunpack.c.h.b16 %v263
    %v918 = vunpack.c.l.b16 %v264
    %v919 = vunpack.c.l.b16 %v265
    %v920 = vunpack.c.h.b16 %v265
    %v921 = vunpack.c.l.b16 %v266
    %v922 = vunpack.c.l.b16 %v267
    %v923 = vunpack.c.h.b16 %v267
    %v924 = vunpack.c.l.b16 %v268
    %v925 = vunpack.c.l.b16 %v269
    %v926 = vunpack.c.h.b16 %v269
    %v927 = vunpack.c.l.b16 %v270
    %v928 = vunpack.c.l.b16 %v271
    %v929 = vunpack.c.h.b16 %v271
    %v930 = vunpack.c.l.b16 %v272
    %v931 = vunpack.c.l.b16 %v273
    %v932 = vunpack.c.h.b16 %v273
    %v933 = vunpack.c.l.b16 %v274
    %v934 = vunpack.c.l.b16 %v275
    %v935 = vunpack.c.h.b16 %v275
    %v936 = vunpack.c.l.b16 %v276
    %v937 = vunpack.c.l.b16 %v277
    %v938 = vunpack.c.h.b16 %v277
    %v939 = vunpack.c.l.b16 %v278
    %v940 = vunpack.c.l.b16 %v279
    %v941 = vunpack.c.h.b16 %v279
    %v942 = vunpack.c.l.b16 %v280
    %v943 = vunpack.c.l.b16 %v281
    %v944 = vunpack.c.h.b16 %v281
    %v945 = vunpack.c.l.b16 %v282
    %v946 = vunpack.c.l.b16 %v283
    %v947 = vunpack.c.h.b16 %v283
    %v948 = vunpack.c.l.b16 %v284
    %v949 = vunpack.c.l.b16 %v285
    %v950 = vunpack.c.h.b16 %v285
    %v951 = vunpack.c.l.b16 %v286
    %v952 = vunpack.c.l.b16 %v287
    %v953 = vunpack.c.h.b16 %v287
    %v954 = vunpack.c.l.b16 %v288
    %v955 = vunpack.c.l.b16 %v289
    %v956 = vunpack.c.h.b16 %v289
    %v957 = vunpack.c.l.b16 %v290
    %v958 = vunpack.c.l.b16 %v291
    %v959 = vunpack.c.h.b16 %v291
    %v960 = vunpack.c.l.b16 %v292
    %v961 = vunpack.c.l.b16 %v293
    %v962 = vunpack.c.h.b16 %v293
    %v963 = vunpack.c.l.b16 %v294
    %v964 = vunpack.c.l.b16 %v295
    %v965 = vunpack.c.h.b16 %v295
    %v966 = vunpack.c.l.b16 %v296
    %v967 = vunpack.c.l.b16 %v297
    %v968 = vunpack.c.h.b16 %v297
    %v969 = vunpack.c.l.b16 %v298
    %v970 = vunpack.c.l.b16 %v299
    %v971 = vunpack.c.h.b16 %v299
    %v972 = vunpack.c.l.b16 %v300
    %v973 = vunpack.c.l.b16 %v301
    %v974 = vunpack.c.h.b16 %v301
    %v975 = vunpack.c.l.b16 %v302
    %v976 = vunpack.c.l.b16 %v303
    %v977 = vunpack.c.h.b16 %v303
    %v978 = vunpack.c.l.b16 %v304
    %v979 = vunpack.c.l.b16 %v305
    %v980 = vunpack.c.h.b16 %v305
    %v981 = vunpack.c.l.b16 %v306
    %v982 = vunpack.c.l.b16 %v307
    %v983 = vunpack.c.h.b16 %v307
    %v984 = vunpack.c.l.b16 %v308
    %v985 = vunpack.c.l.b16 %v309
    %v986 = vunpack.c.h.b16 %v309
    %v987 = vunpack.c.l.b16 %v310
    %v988 = vunpack.c.l.b16 %v311
    %v989 = vunpack.c.h.b16 %v311
    %v990 = vunpack.c.l.b16 %v312
    %v991 = vunpack.c.l.b16 %v313
    %v992 = vunpack.c.h.b16 %v313
    %v993 = vunpack.c.l.b16 %v314
    %v994 = vunpack.c.l.b16 %v315
    %v995 = vunpack.c.h.b16 %v315
    %v996 = vunpack.c.l.b16 %v316
    %v997 = vunpack.c.l.b16 %v317
    %v998 = vunpack.c.h.b16 %v317
    %v999 = vunpack.c.l.b16 %v318
    %v1000 = vunpack.c.l.b16 %v319
    %v1001 = vunpack.c.h.b16 %v319
    %v1002 = vunpack.c.l.b16 %v320
    %v1003 = vunpack.c.l.b16 %v321
    %v1004 = vunpack.c.h.b16 %v321
    %v1005 = vunpack.c.l.b16 %v322
    %v1006 = vunpack.c.l.b16 %v323
    %v1007 = vunpack.c.h.b16 %v323
    %v1008 = vunpack.c.l.b16 %v324
    %v1009 = vunpack.c.l.b16 %v325
    %v1010 = vunpack.c.h.b16 %v325
    %v1011 = vunpack.c.l.b16 %v326
    %v1012 = vpack.c.b16 %v631, %v628
    %v1013 = vpack.c.b16 %v632, %v629
    %v1014 = vpack.c.b16 %v633, %v630
    %v1015 = vpack.c.b16 %v637, %v634
    %v1016 = vpack.c.b16 %v638, %v635
    %v1017 = vpack.c.b16 %v639, %v636
    %v1018 = vpack.c.b16 %v643, %v640
    %v1019 = vpack.c.b16 %v644, %v641
    %v1020 = vpack.c.b16 %v645, %v642
    %v1021 = vpack.c.b16 %v649, %v646
    %v1022 = vpack.c.b16 %v650, %v647
    %v1023 = vpack.c.b16 %v651, %v648
    %v1024 = vpack.c.b16 %v655, %v652
    %v1025 = vpack.c.b16 %v656, %v653
    %v1026 = vpack.c.b16 %v657, %v654
    %v1027 = vpack.c.b16 %v661, %v658
    %v1028 = vpack.c.b16 %v662, %v659
    %v1029 = vpack.c.b16 %v663, %v660
    %v1030 = vpack.c.b16 %v667, %v664
    %v1031 = vpack.c.b16 %v668, %v665
    %v1032 = vpack.c.b16 %v669, %v666
    %v1033 = vpack.c.b16 %v673, %v670
    %v1034 = vpack.c.b16 %v674, %v671
    %v1035 = vpack.c.b16 %v675, %v672
    %v1036 = vpack.c.b16 %v679, %v676
    %v1037 = vpack.c.b16 %v680, %v677
    %v1038 = vpack.c.b16 %v681, %v678
    %v1039 = vpack.c.b16 %v685, %v682
    %v1040 = vpack.c.b16 %v686, %v683
    %v1041 = vpack.c.b16 %v687, %v684
    %v1042 = vpack.c.b16 %v691, %v688
    %v1043 = vpack.c.b16 %v692, %v689
    %v1044 = vpack.c.b16 %v693, %v690
    %v1045 = vpack.c.b16 %v697, %v694
    %v1046 = vpack.c.b16 %v698, %v695
    %v1047 = vpack.c.b16 %v699, %v696
    %v1048 = vpack.c.b16 %v703, %v700
    %v1049 = vpack.c.b16 %v704, %v701
    %v1050 = vpack.c.b16 %v705, %v702
    %v1051 = vpack.c.b16 %v709, %v706
    %v1052 = vpack.c.b16 %v710, %v707
    %v1053 = vpack.c.b16 %v711, %v708
    %v1054 = vpack.c.b16 %v715, %v712
    %v1055 = vpack.c.b16 %v716, %v713
    %v1056 = vpack.c.b16 %v717, %v714
    %v1057 = vpack.c.b16 %v721, %v718
    %v1058 = vpack.c.b16 %v722, %v719
    %v1059 = vpack.c.b16 %v723, %v720
    %v1060 = vpack.c.b16 %v727, %v724
    %v1061 = vpack.c.b16 %v728, %v725
    %v1062 = vpack.c.b16 %v729, %v726
    %v1063 = vpack.c.b16 %v733, %v730
    %v1064 = vpack.c.b16 %v734, %v731
    %v1065 = vpack.c.b16 %v735, %v732
    %v1066 = vpack.c.b16 %v739, %v736
    %v1067 = vpack.c.b16 %v740, %v737
    %v1068 = vpack.c.b16 %v741, %v738
    %v1069 = vpack.c.b16 %v745, %v742
    %v1070 = vpack.c.b16 %v746, %v743
    %v1071 = vpack.c.b16 %v747, %v744
    %v1072 = vpack.c.b16 %v751, %v748
    %v1073 = vpack.c.b16 %v752, %v749
    %v1074 = vpack.c.b16 %v753, %v750
    %v1075 = vpack.c.b16 %v757, %v754
    %v1076 = vpack.c.b16 %v758, %v755
    %v1077 = vpack.c.b16 %v759, %v756
    %v1078 = vpack.c.b16 %v763, %v760
    %v1079 = vpack.c.b16 %v764, %v761
    %v1080 = vpack.c.b16 %v765, %v762
    %v1081 = vpack.c.b16 %v769, %v766
    %v1082 = vpack.c.b16 %v770, %v767
    %v1083 = vpack.c.b16 %v771, %v768
    %v1084 = vpack.c.b16 %v775, %v772
    %v1085 = vpack.c.b16 %v776, %v773
    %v1086 = vpack.c.b16 %v777, %v774
    %v1087 = vpack.c.b16 %v781, %v778
    %v1088 = vpack.c.b16 %v782, %v779
    %v1089 = vpack.c.b16 %v783, %v780
    %v1090 = vpack.c.b16 %v787, %v784
    %v1091 = vpack.c.b16 %v788, %v785
    %v1092 = vpack.c.b16 %v789, %v786
    %v1093 = vpack.c.b16 %v793, %v790
    %v1094 = vpack.c.b16 %v794, %v791
    %v1095 = vpack.c.b16 %v795, %v792
    %v1096 = vpack.c.b16 %v799, %v796
    %v1097 = vpack.c.b16 %v800, %v797
    %v1098 = vpack.c.b16 %v801, %v798
    %v1099 = vpack.c.b16 %v805, %v802
    %v1100 = vpack.c.b16 %v806, %v803
    %v1101 = vpack.c.b16 %v807, %v804
    %v1102 = vpack.c.b16 %v811, %v808
    %v1103 = vpack.c.b16 %v812, %v809
    %v1104 = vpack.c.b16 %v813, %v810
    %v1105 = vpack.c.b16 %v817, %v814
    %v1106 = vpack.c.b16 %v818, %v815
    %v1107 = vpack.c.b16 %v819, %v816
    %v1108 = vpack.c.b16 %v823, %v820
    %v1109 = vpack.c.b16 %v824, %v821
    %v1110 = vpack.c.b16 %v825, %v822
    %v1111 = vpack.c.b16 %v829, %v826
    %v1112 = vpack.c.b16 %v830, %v827
    %v1113 = vpack.c.b16 %v831, %v828
    %v1114 = vpack.c.b16 %v835, %v832
    %v1115 = vpack.c.b16 %v836, %v833
    %v1116 = vpack.c.b16 %v837, %v834
    %v1117 = vpack.c.b16 %v841, %v838
    %v1118 = vpack.c.b16 %v842, %v839
    %v1119 = vpack.c.b16 %v843, %v840
    %v1120 = vpack.c.b16 %v847, %v844
    %v1121 = vpack.c.b16 %v848, %v845
    %v1122 = vpack.c.b16 %v849, %v846
    %v1123 = vpack.c.b16 %v853, %v850
    %v1124 = vpack.c.b16 %v854, %v851
    %v1125 = vpack.c.b16 %v855, %v852
    %v1126 = vpack.c.b16 %v859, %v856
    %v1127 = vpack.c.b16 %v860, %v857
    %v1128 = vpack.c.b16 %v861, %v858
    %v1129 = vpack.c.b16 %v865, %v862
    %v1130 = vpack.c.b16 %v866, %v863
    %v1131 = vpack.c.b16 %v867, %v864
    %v1132 = vpack.c.b16 %v871, %v868
    %v1133 = vpack.c.b16 %v872, %v869
    %v1134 = vpack.c.b16 %v873, %v870
    %v1135 = vpack.c.b16 %v877, %v874
    %v1136 = vpack.c.b16 %v878, %v875
    %v1137 = vpack.c.b16 %v879, %v876
    %v1138 = vpack.c.b16 %v883, %v880
    %v1139 = vpack.c.b16 %v884, %v881
    %v1140 = vpack.c.b16 %v885, %v882
    %v1141 = vpack.c.b16 %v889, %v886
    %v1142 = vpack.c.b16 %v890, %v887
    %v1143 = vpack.c.b16 %v891, %v888
    %v1144 = vpack.c.b16 %v895, %v892
    %v1145 = vpack.c.b16 %v896, %v893
    %v1146 = vpack.c.b16 %v897, %v894
    %v1147 = vpack.c.b16 %v901, %v898
    %v1148 = vpack.c.b16 %v902, %v899
    %v1149 = vpack.c.b16 %v903, %v900
    %v1150 = vpack.c.b16 %v907, %v904
    %v1151 = vpack.c.b16 %v908, %v905
    %v1152 = vpack.c.b16 %v909, %v906
    %v1153 = vpack.c.b16 %v913, %v910
    %v1154 = vpack.c.b16 %v914, %v911
    %v1155 = vpack.c.b16 %v915, %v912
    %v1156 = vpack.c.b16 %v919, %v916
    %v1157 = vpack.c.b16 %v920, %v917
    %v1158 = vpack.c.b16 %v921, %v918
    %v1159 = vpack.c.b16 %v925, %v922
    %v1160 = vpack.c.b16 %v926, %v923
    %v1161 = vpack.c.b16 %v927, %v924
    %v1162 = vpack.c.b16 %v931, %v928
    %v1163 = vpack.c.b16 %v932, %v929
    %v1164 = vpack.c.b16 %v933, %v930
    %v1165 = vpack.c.b16 %v937, %v934
    %v1166 = vpack.c.b16 %v938, %v935
    %v1167 = vpack.c.b16 %v939, %v936
    %v1168 = vpack.c.b16 %v943, %v940
    %v1169 = vpack.c.b16 %v944, %v941
    %v1170 = vpack.c.b16 %v945, %v942
    %v1171 = vpack.c.b16 %v949, %v946
    %v1172 = vpack.c.b16 %v950, %v947
    %v1173 = vpack.c.b16 %v951, %v948
    %v1174 = vpack.c.b16 %v955, %v952
    %v1175 = vpack.c.b16 %v956, %v953
    %v1176 = vpack.c.b16 %v957, %v954
    %v1177 = vpack.c.b16 %v961, %v958
    %v1178 = vpack.c.b16 %v962, %v959
    %v1179 = vpack.c.b16 %v963, %v960
    %v1180 = vpack.c.b16 %v967, %v964
    %v1181 = vpack.c.b16 %v968, %v965
    %v1182 = vpack.c.b16 %v969, %v966
    %v1183 = vpack.c.b16 %v973, %v970
    %v1184 = vpack.c.b16 %v974, %v971
    %v1185 = vpack.c.b16 %v975, %v972
    %v1186 = vpack.c.b16 %v979, %v976
    %v1187 = vpack.c.b16 %v980, %v977
    %v1188 = vpack.c.b16 %v981, %v978
    %v1189 = vpack.c.b16 %v985, %v982
    %v1190 = vpack.c.b16 %v986, %v983
    %v1191 = vpack.c.b16 %v987, %v984
    %v1192 = vpack.c.b16 %v991, %v988
    %v1193 = vpack.c.b16 %v992, %v989
    %v1194 = vpack.c.b16 %v993, %v990
    %v1195 = vpack.c.b16 %v997, %v994
    %v1196 = vpack.c.b16 %v998, %v995
    %v1197 = vpack.c.b16 %v999, %v996
    %v1198 = vpack.c.b16 %v1003, %v1000
    %v1199 = vpack.c.b16 %v1004, %v1001
    %v1200 = vpack.c.b16 %v1005, %v1002
    %v1201 = vpack.c.b16 %v1009, %v1006
    %v1202 = vpack.c.b16 %v1010, %v1007
    %v1203 = vpack.c.b16 %v1011, %v1008
    %1396 = vmatprep.subr.bf16.mxu0 %v1013
    %1397 = vmatpush1.bf16.msra.mxu0 %v1012
    %1398 = vmatprep.subr.bf16.mxu0 %v1016
    %1399 = vmatpush1.bf16.msra.mxu0 %v1015
    %1400 = vmatprep.subr.bf16.mxu0 %v1019
    %1401 = vmatpush1.bf16.msra.mxu0 %v1018
    %1402 = vmatprep.subr.bf16.mxu0 %v1022
    %1403 = vmatpush1.bf16.msra.mxu0 %v1021
    %1404 = vmatprep.subr.bf16.mxu0 %v1025
    %1405 = vmatpush1.bf16.msra.mxu0 %v1024
    %1406 = vmatprep.subr.bf16.mxu0 %v1028
    %1407 = vmatpush1.bf16.msra.mxu0 %v1027
    %1408 = vmatprep.subr.bf16.mxu0 %v1031
    %1409 = vmatpush1.bf16.msra.mxu0 %v1030
    %1410 = vmatprep.subr.bf16.mxu0 %v1034
    %1411 = vmatpush1.bf16.msra.mxu0 %v1033
    %1412 = vmatprep.subr.bf16.mxu0 %v1037
    %1413 = vmatpush1.bf16.msra.mxu0 %v1036
    %1414 = vmatprep.subr.bf16.mxu0 %v1040
    %1415 = vmatpush1.bf16.msra.mxu0 %v1039
    %1416 = vmatprep.subr.bf16.mxu0 %v1043
    %1417 = vmatpush1.bf16.msra.mxu0 %v1042
    %1418 = vmatprep.subr.bf16.mxu0 %v1046
    %1419 = vmatpush1.bf16.msra.mxu0 %v1045
    %1420 = vmatprep.subr.bf16.mxu0 %v1049
    %1421 = vmatpush1.bf16.msra.mxu0 %v1048
    %1422 = vmatprep.subr.bf16.mxu0 %v1052
    %1423 = vmatpush1.bf16.msra.mxu0 %v1051
    %1424 = vmatprep.subr.bf16.mxu0 %v1055
    %1425 = vmatpush1.bf16.msra.mxu0 %v1054
    %1426 = vmatprep.subr.bf16.mxu0 %v1058
    %1427 = vmatpush1.bf16.msra.mxu0 %v1057
    %1428 = vmatprep.mubr.bf16.mxu0 %v357
    %1429 = vmatmul.mubr.bf16.gmra.mrb[0].mxu0 %v356
    %v1430 = vpop.f32.mrb[0].mxu0
    %v1431 = vadd.f32 %v332, %v1430
    %v1432 = vpop.f32.mrb[0].mxu0
    %v1433 = vadd.f32 %v336, %v1432
    %v1434 = vpop.f32.mrb[0].mxu0
    %v1435 = vpop.f32.mrb[0].mxu0
    %1436 = vdwg.mxu0
    %1437 = vmatprep.subr.bf16.mxu0 %v1061
    %1438 = vmatpush1.bf16.msra.mxu0 %v1060
    %1439 = vmatprep.subr.bf16.mxu0 %v1064
    %1440 = vmatpush1.bf16.msra.mxu0 %v1063
    %1441 = vmatprep.subr.bf16.mxu0 %v1067
    %1442 = vmatpush1.bf16.msra.mxu0 %v1066
    %1443 = vmatprep.subr.bf16.mxu0 %v1070
    %1444 = vmatpush1.bf16.msra.mxu0 %v1069
    %1445 = vmatprep.subr.bf16.mxu0 %v1073
    %1446 = vmatpush1.bf16.msra.mxu0 %v1072
    %1447 = vmatprep.subr.bf16.mxu0 %v1076
    %1448 = vmatpush1.bf16.msra.mxu0 %v1075
    %1449 = vmatprep.subr.bf16.mxu0 %v1079
    %1450 = vmatpush1.bf16.msra.mxu0 %v1078
    %1451 = vmatprep.subr.bf16.mxu0 %v1082
    %1452 = vmatpush1.bf16.msra.mxu0 %v1081
    %1453 = vmatprep.subr.bf16.mxu0 %v1085
    %1454 = vmatpush1.bf16.msra.mxu0 %v1084
    %1455 = vmatprep.subr.bf16.mxu0 %v1088
    %1456 = vmatpush1.bf16.msra.mxu0 %v1087
    %1457 = vmatprep.subr.bf16.mxu0 %v1091
    %1458 = vmatpush1.bf16.msra.mxu0 %v1090
    %1459 = vmatprep.subr.bf16.mxu0 %v1094
    %1460 = vmatpush1.bf16.msra.mxu0 %v1093
    %1461 = vmatprep.subr.bf16.mxu0 %v1097
    %1462 = vmatpush1.bf16.msra.mxu0 %v1096
    %1463 = vmatprep.subr.bf16.mxu0 %v1100
    %1464 = vmatpush1.bf16.msra.mxu0 %v1099
    %1465 = vmatprep.subr.bf16.mxu0 %v1103
    %1466 = vmatpush1.bf16.msra.mxu0 %v1102
    %1467 = vmatprep.subr.bf16.mxu0 %v1106
    %1468 = vmatpush1.bf16.msra.mxu0 %v1105
    %1469 = vmatprep.mubr.bf16.mxu0 %v359
    %1470 = vmatmul.mubr.bf16.gmra.mrb[0].mxu0 %v358
    %v1471 = vpop.f32.mrb[0].mxu0
    %v1472 = vadd.f32 %v1431, %v1471
    %v1473 = vpop.f32.mrb[0].mxu0
    %v1474 = vadd.f32 %v1433, %v1473
    %v1475 = vpop.f32.mrb[0].mxu0
    %v1476 = vpop.f32.mrb[0].mxu0
    %1477 = vdwg.mxu0
    %1478 = vmatprep.subr.bf16.mxu0 %v1109
    %1479 = vmatpush1.bf16.msra.mxu0 %v1108
    %1480 = vmatprep.subr.bf16.mxu0 %v1112
    %1481 = vmatpush1.bf16.msra.mxu0 %v1111
    %1482 = vmatprep.subr.bf16.mxu0 %v1115
    %1483 = vmatpush1.bf16.msra.mxu0 %v1114
    %1484 = vmatprep.subr.bf16.mxu0 %v1118
    %1485 = vmatpush1.bf16.msra.mxu0 %v1117
    %1486 = vmatprep.subr.bf16.mxu0 %v1121
    %1487 = vmatpush1.bf16.msra.mxu0 %v1120
    %1488 = vmatprep.subr.bf16.mxu0 %v1124
    %1489 = vmatpush1.bf16.msra.mxu0 %v1123
    %1490 = vmatprep.subr.bf16.mxu0 %v1127
    %1491 = vmatpush1.bf16.msra.mxu0 %v1126
    %1492 = vmatprep.subr.bf16.mxu0 %v1130
    %1493 = vmatpush1.bf16.msra.mxu0 %v1129
    %1494 = vmatprep.subr.bf16.mxu0 %v1133
    %1495 = vmatpush1.bf16.msra.mxu0 %v1132
    %1496 = vmatprep.subr.bf16.mxu0 %v1136
    %1497 = vmatpush1.bf16.msra.mxu0 %v1135
    %1498 = vmatprep.subr.bf16.mxu0 %v1139
    %1499 = vmatpush1.bf16.msra.mxu0 %v1138
    %1500 = vmatprep.subr.bf16.mxu0 %v1142
    %1501 = vmatpush1.bf16.msra.mxu0 %v1141
    %1502 = vmatprep.subr.bf16.mxu0 %v1145
    %1503 = vmatpush1.bf16.msra.mxu0 %v1144
    %1504 = vmatprep.subr.bf16.mxu0 %v1148
    %1505 = vmatpush1.bf16.msra.mxu0 %v1147
    %1506 = vmatprep.subr.bf16.mxu0 %v1151
    %1507 = vmatpush1.bf16.msra.mxu0 %v1150
    %1508 = vmatprep.subr.bf16.mxu0 %v1154
    %1509 = vmatpush1.bf16.msra.mxu0 %v1153
    %1510 = vmatprep.mubr.bf16.mxu0 %v361
    %1511 = vmatmul.mubr.bf16.gmra.mrb[0].mxu0 %v360
    %v1512 = vpop.f32.mrb[0].mxu0
    %v1513 = vadd.f32 %v1472, %v1512
    %v1514 = vpop.f32.mrb[0].mxu0
    %v1515 = vadd.f32 %v1474, %v1514
    %v1516 = vpop.f32.mrb[0].mxu0
    %v1517 = vpop.f32.mrb[0].mxu0
    %1518 = vdwg.mxu0
    %1519 = vmatprep.subr.bf16.mxu0 %v1157
    %1520 = vmatpush1.bf16.msra.mxu0 %v1156
    %1521 = vmatprep.subr.bf16.mxu0 %v1160
    %1522 = vmatpush1.bf16.msra.mxu0 %v1159
    %1523 = vmatprep.subr.bf16.mxu0 %v1163
    %1524 = vmatpush1.bf16.msra.mxu0 %v1162
    %1525 = vmatprep.subr.bf16.mxu0 %v1166
    %1526 = vmatpush1.bf16.msra.mxu0 %v1165
    %1527 = vmatprep.subr.bf16.mxu0 %v1169
    %1528 = vmatpush1.bf16.msra.mxu0 %v1168
    %1529 = vmatprep.subr.bf16.mxu0 %v1172
    %1530 = vmatpush1.bf16.msra.mxu0 %v1171
    %1531 = vmatprep.subr.bf16.mxu0 %v1175
    %1532 = vmatpush1.bf16.msra.mxu0 %v1174
    %1533 = vmatprep.subr.bf16.mxu0 %v1178
    %1534 = vmatpush1.bf16.msra.mxu0 %v1177
    %1535 = vmatprep.subr.bf16.mxu0 %v1181
    %1536 = vmatpush1.bf16.msra.mxu0 %v1180
    %1537 = vmatprep.subr.bf16.mxu0 %v1184
    %1538 = vmatpush1.bf16.msra.mxu0 %v1183
    %1539 = vmatprep.subr.bf16.mxu0 %v1187
    %1540 = vmatpush1.bf16.msra.mxu0 %v1186
    %1541 = vmatprep.subr.bf16.mxu0 %v1190
    %1542 = vmatpush1.bf16.msra.mxu0 %v1189
    %1543 = vmatprep.subr.bf16.mxu0 %v1193
    %1544 = vmatpush1.bf16.msra.mxu0 %v1192
    %1545 = vmatprep.subr.bf16.mxu0 %v1196
    %1546 = vmatpush1.bf16.msra.mxu0 %v1195
    %1547 = vmatprep.subr.bf16.mxu0 %v1199
    %1548 = vmatpush1.bf16.msra.mxu0 %v1198
    %1549 = vmatprep.subr.bf16.mxu0 %v1202
    %1550 = vmatpush1.bf16.msra.mxu0 %v1201
    %1551 = vmatprep.mubr.bf16.mxu0 %v363
    %1552 = vmatmul.mubr.bf16.gmra.mrb[0].mxu0 %v362
    %v1553 = vpop.f32.mrb[0].mxu0
    %v1554 = vadd.f32 %v1513, %v1553
    %v1555 = vpop.f32.mrb[0].mxu0
    %v1556 = vadd.f32 %v1515, %v1555
    %v1557 = vpop.f32.mrb[0].mxu0
    %v1558 = vpop.f32.mrb[0].mxu0
    %1559 = vdwg.mxu0
    %1560 = vmatprep.subr.bf16.mxu0 0
    %1561 = vmatpush1.bf16.msra.mxu0 %v1014
    %1562 = vmatprep.subr.bf16.mxu0 0
    %1563 = vmatpush1.bf16.msra.mxu0 %v1017
    %1564 = vmatprep.subr.bf16.mxu0 0
    %1565 = vmatpush1.bf16.msra.mxu0 %v1020
    %1566 = vmatprep.subr.bf16.mxu0 0
    %1567 = vmatpush1.bf16.msra.mxu0 %v1023
    %1568 = vmatprep.subr.bf16.mxu0 0
    %1569 = vmatpush1.bf16.msra.mxu0 %v1026
    %1570 = vmatprep.subr.bf16.mxu0 0
    %1571 = vmatpush1.bf16.msra.mxu0 %v1029
    %1572 = vmatprep.subr.bf16.mxu0 0
    %1573 = vmatpush1.bf16.msra.mxu0 %v1032
    %1574 = vmatprep.subr.bf16.mxu0 0
    %1575 = vmatpush1.bf16.msra.mxu0 %v1035
    %1576 = vmatprep.subr.bf16.mxu0 0
    %1577 = vmatpush1.bf16.msra.mxu0 %v1038
    %1578 = vmatprep.subr.bf16.mxu0 0
    %1579 = vmatpush1.bf16.msra.mxu0 %v1041
    %1580 = vmatprep.subr.bf16.mxu0 0
    %1581 = vmatpush1.bf16.msra.mxu0 %v1044
    %1582 = vmatprep.subr.bf16.mxu0 0
    %1583 = vmatpush1.bf16.msra.mxu0 %v1047
    %1584 = vmatprep.subr.bf16.mxu0 0
    %1585 = vmatpush1.bf16.msra.mxu0 %v1050
    %1586 = vmatprep.subr.bf16.mxu0 0
    %1587 = vmatpush1.bf16.msra.mxu0 %v1053
    %1588 = vmatprep.subr.bf16.mxu0 0
    %1589 = vmatpush1.bf16.msra.mxu0 %v1056
    %1590 = vmatprep.subr.bf16.mxu0 0
    %1591 = vmatpush1.bf16.msra.mxu0 %v1059
    %1592 = vmatprep.mubr.bf16.mxu0 %v357
    %1593 = vmatmul.mubr.bf16.gmra.mrb[0].mxu0 %v356
    %v1594 = vpop.f32.mrb[0].mxu0
    %v1595 = vadd.f32 %v340, %v1594
    %v1596 = vpop.f32.mrb[0].mxu0
    %v1597 = vpop.f32.mrb[0].mxu0
    %v1598 = vpop.f32.mrb[0].mxu0
    %1599 = vdwg.mxu0
    %1600 = vmatprep.subr.bf16.mxu0 0
    %1601 = vmatpush1.bf16.msra.mxu0 %v1062
    %1602 = vmatprep.subr.bf16.mxu0 0
    %1603 = vmatpush1.bf16.msra.mxu0 %v1065
    %1604 = vmatprep.subr.bf16.mxu0 0
    %1605 = vmatpush1.bf16.msra.mxu0 %v1068
    %1606 = vmatprep.subr.bf16.mxu0 0
    %1607 = vmatpush1.bf16.msra.mxu0 %v1071
    %1608 = vmatprep.subr.bf16.mxu0 0
    %1609 = vmatpush1.bf16.msra.mxu0 %v1074
    %1610 = vmatprep.subr.bf16.mxu0 0
    %1611 = vmatpush1.bf16.msra.mxu0 %v1077
    %1612 = vmatprep.subr.bf16.mxu0 0
    %1613 = vmatpush1.bf16.msra.mxu0 %v1080
    %1614 = vmatprep.subr.bf16.mxu0 0
    %1615 = vmatpush1.bf16.msra.mxu0 %v1083
    %1616 = vmatprep.subr.bf16.mxu0 0
    %1617 = vmatpush1.bf16.msra.mxu0 %v1086
    %1618 = vmatprep.subr.bf16.mxu0 0
    %1619 = vmatpush1.bf16.msra.mxu0 %v1089
    %1620 = vmatprep.subr.bf16.mxu0 0
    %1621 = vmatpush1.bf16.msra.mxu0 %v1092
    %1622 = vmatprep.subr.bf16.mxu0 0
    %1623 = vmatpush1.bf16.msra.mxu0 %v1095
    %1624 = vmatprep.subr.bf16.mxu0 0
    %1625 = vmatpush1.bf16.msra.mxu0 %v1098
    %1626 = vmatprep.subr.bf16.mxu0 0
    %1627 = vmatpush1.bf16.msra.mxu0 %v1101
    %1628 = vmatprep.subr.bf16.mxu0 0
    %1629 = vmatpush1.bf16.msra.mxu0 %v1104
    %1630 = vmatprep.subr.bf16.mxu0 0
    %1631 = vmatpush1.bf16.msra.mxu0 %v1107
    %1632 = vmatprep.mubr.bf16.mxu0 %v359
    %1633 = vmatmul.mubr.bf16.gmra.mrb[0].mxu0 %v358
    %v1634 = vpop.f32.mrb[0].mxu0
    %v1635 = vadd.f32 %v1595, %v1634
    %v1636 = vpop.f32.mrb[0].mxu0
    %v1637 = vpop.f32.mrb[0].mxu0
    %v1638 = vpop.f32.mrb[0].mxu0
    %1639 = vdwg.mxu0
    %1640 = vmatprep.subr.bf16.mxu0 0
    %1641 = vmatpush1.bf16.msra.mxu0 %v1110
    %1642 = vmatprep.subr.bf16.mxu0 0
    %1643 = vmatpush1.bf16.msra.mxu0 %v1113
    %1644 = vmatprep.subr.bf16.mxu0 0
    %1645 = vmatpush1.bf16.msra.mxu0 %v1116
    %1646 = vmatprep.subr.bf16.mxu0 0
    %1647 = vmatpush1.bf16.msra.mxu0 %v1119
    %1648 = vmatprep.subr.bf16.mxu0 0
    %1649 = vmatpush1.bf16.msra.mxu0 %v1122
    %1650 = vmatprep.subr.bf16.mxu0 0
    %1651 = vmatpush1.bf16.msra.mxu0 %v1125
    %1652 = vmatprep.subr.bf16.mxu0 0
    %1653 = vmatpush1.bf16.msra.mxu0 %v1128
    %1654 = vmatprep.subr.bf16.mxu0 0
    %1655 = vmatpush1.bf16.msra.mxu0 %v1131
    %1656 = vmatprep.subr.bf16.mxu0 0
    %1657 = vmatpush1.bf16.msra.mxu0 %v1134
    %1658 = vmatprep.subr.bf16.mxu0 0
    %1659 = vmatpush1.bf16.msra.mxu0 %v1137
    %1660 = vmatprep.subr.bf16.mxu0 0
    %1661 = vmatpush1.bf16.msra.mxu0 %v1140
    %1662 = vmatprep.subr.bf16.mxu0 0
    %1663 = vmatpush1.bf16.msra.mxu0 %v1143
    %1664 = vmatprep.subr.bf16.mxu0 0
    %1665 = vmatpush1.bf16.msra.mxu0 %v1146
    %1666 = vmatprep.subr.bf16.mxu0 0
    %1667 = vmatpush1.bf16.msra.mxu0 %v1149
    %1668 = vmatprep.subr.bf16.mxu0 0
    %1669 = vmatpush1.bf16.msra.mxu0 %v1152
    %1670 = vmatprep.subr.bf16.mxu0 0
    %1671 = vmatpush1.bf16.msra.mxu0 %v1155
    %1672 = vmatprep.mubr.bf16.mxu0 %v361
    %1673 = vmatmul.mubr.bf16.gmra.mrb[0].mxu0 %v360
    %v1674 = vpop.f32.mrb[0].mxu0
    %v1675 = vadd.f32 %v1635, %v1674
    %v1676 = vpop.f32.mrb[0].mxu0
    %v1677 = vpop.f32.mrb[0].mxu0
    %v1678 = vpop.f32.mrb[0].mxu0
    %1679 = vdwg.mxu0
    %1680 = vmatprep.subr.bf16.mxu0 0
    %1681 = vmatpush1.bf16.msra.mxu0 %v1158
    %1682 = vmatprep.subr.bf16.mxu0 0
    %1683 = vmatpush1.bf16.msra.mxu0 %v1161
    %1684 = vmatprep.subr.bf16.mxu0 0
    %1685 = vmatpush1.bf16.msra.mxu0 %v1164
    %1686 = vmatprep.subr.bf16.mxu0 0
    %1687 = vmatpush1.bf16.msra.mxu0 %v1167
    %1688 = vmatprep.subr.bf16.mxu0 0
    %1689 = vmatpush1.bf16.msra.mxu0 %v1170
    %1690 = vmatprep.subr.bf16.mxu0 0
    %1691 = vmatpush1.bf16.msra.mxu0 %v1173
    %1692 = vmatprep.subr.bf16.mxu0 0
    %1693 = vmatpush1.bf16.msra.mxu0 %v1176
    %1694 = vmatprep.subr.bf16.mxu0 0
    %1695 = vmatpush1.bf16.msra.mxu0 %v1179
    %1696 = vmatprep.subr.bf16.mxu0 0
    %1697 = vmatpush1.bf16.msra.mxu0 %v1182
    %1698 = vmatprep.subr.bf16.mxu0 0
    %1699 = vmatpush1.bf16.msra.mxu0 %v1185
    %1700 = vmatprep.subr.bf16.mxu0 0
    %1701 = vmatpush1.bf16.msra.mxu0 %v1188
    %1702 = vmatprep.subr.bf16.mxu0 0
    %1703 = vmatpush1.bf16.msra.mxu0 %v1191
    %1704 = vmatprep.subr.bf16.mxu0 0
    %1705 = vmatpush1.bf16.msra.mxu0 %v1194
    %1706 = vmatprep.subr.bf16.mxu0 0
    %1707 = vmatpush1.bf16.msra.mxu0 %v1197
    %1708 = vmatprep.subr.bf16.mxu0 0
    %1709 = vmatpush1.bf16.msra.mxu0 %v1200
    %1710 = vmatprep.subr.bf16.mxu0 0
    %1711 = vmatpush1.bf16.msra.mxu0 %v1203
    %1712 = vmatprep.mubr.bf16.mxu0 %v363
    %1713 = vmatmul.mubr.bf16.gmra.mrb[0].mxu0 %v362
    %v1714 = vpop.f32.mrb[0].mxu0
    %v1715 = vadd.f32 %v1675, %v1714
    %v1716 = vpop.f32.mrb[0].mxu0
    %v1717 = vpop.f32.mrb[0].mxu0
    %v1718 = vpop.f32.mrb[0].mxu0
    %1719 = vdwg.mxu0
    %v1720 = vmax.f32 %v1554, 0.0
    %v1721 = vmax.f32 %v1556, 0.0
    %v1722 = vmax.f32 %v1715, 0.0
    %1723 = vst [vmem:[#allocation9] sm:$0xff] %v1722
    %v1724 = vld [vmem:[%s3] sm:$0x7]
    %v1726 = vlaneseq
    %v1727 = vshrl.u32 %v1726, 7
    %v1728 = vsub.s32 0, %v1727
    %v1729 = vrot.slane %v1724, %v1728
    %v1730 = vlaneseq
    %v1731 = vshrl.u32 %v1730, 7
    %v1732 = vsub.s32 1, %v1731
    %v1733 = vrot.slane %v1724, %v1732
    %v1734 = vlaneseq
    %v1735 = vshrl.u32 %v1734, 7
    %v1736 = vsub.s32 2, %v1735
    %v1737 = vrot.slane %v1724, %v1736
    %v1741 = vmul.f32 %v1720, %v1729
    %v1742 = vmul.f32 %v1721, %v1733
    %v1743 = vmul.f32 %v1722, %v1737
    %v1744 = vpack.c.bf16 %v1741, %v1741
    %v1745 = vpack.c.bf16 %v1742, %v1742
    %v1746 = vpack.c.bf16 %v1743, %v1743
    %v1747 = vld [vmem:[#allocation7] sm:$0xf]
    %v1748 = vld [vmem:[#allocation7 + $0x4] sm:$0xf]
    %v1749 = vld [vmem:[#allocation7 + $0x8] sm:$0xf]
    %v1750 = vld [vmem:[#allocation7 + $0xc] sm:$0xf]
    %v1751 = vld [vmem:[#allocation7 + $0x10] sm:$0xf]
    %v1752 = vld [vmem:[#allocation7 + $0x14] sm:$0xf]
    %v1753 = vld [vmem:[#allocation7 + $0x18] sm:$0xf]
    %v1754 = vld [vmem:[#allocation7 + $0x1c] sm:$0xf]
    %v1755 = vld [vmem:[#allocation7 + $0x20] sm:$0xf]
    %v1756 = vld [vmem:[#allocation7 + $0x24] sm:$0xf]
    %v1757 = vld [vmem:[#allocation7 + $0x28] sm:$0xf]
    %v1758 = vld [vmem:[#allocation7 + $0x2c] sm:$0xf]
    %v1759 = vld [vmem:[#allocation7 + $0x30] sm:$0xf]
    %v1760 = vld [vmem:[#allocation7 + $0x34] sm:$0xf]
    %v1761 = vld [vmem:[#allocation7 + $0x38] sm:$0xf]
    %v1762 = vld [vmem:[#allocation7 + $0x3c] sm:$0xf]
    %v1763 = vld [vmem:[#allocation7 + $0x40] sm:$0xf]
    %v1764 = vld [vmem:[#allocation7 + $0x44] sm:$0xf]
    %v1765 = vld [vmem:[#allocation7 + $0x48] sm:$0xf]
    %v1766 = vld [vmem:[#allocation7 + $0x4c] sm:$0xf]
    %v1767 = vld [vmem:[#allocation7 + $0x50] sm:$0xf]
    %v1768 = vld [vmem:[#allocation7 + $0x54] sm:$0xf]
    %v1769 = vld [vmem:[#allocation7 + $0x58] sm:$0xf]
    %v1770 = vld [vmem:[#allocation7 + $0x5c] sm:$0xf]
    %v1771 = vld [vmem:[#allocation7 + $0x60] sm:$0xf]
    %v1772 = vld [vmem:[#allocation7 + $0x64] sm:$0xf]
    %v1773 = vld [vmem:[#allocation7 + $0x68] sm:$0xf]
    %v1774 = vld [vmem:[#allocation7 + $0x6c] sm:$0xf]
    %v1775 = vld [vmem:[#allocation7 + $0x70] sm:$0xf]
    %v1776 = vld [vmem:[#allocation7 + $0x74] sm:$0xf]
    %v1777 = vld [vmem:[#allocation7 + $0x78] sm:$0xf]
    %v1778 = vld [vmem:[#allocation7 + $0x7c] sm:$0xf]
    %v1779 = vld [vmem:[#allocation7 + $0x80] sm:$0xf]
    %v1780 = vld [vmem:[#allocation7 + $0x84] sm:$0xf]
    %v1781 = vld [vmem:[#allocation7 + $0x88] sm:$0xf]
    %v1782 = vld [vmem:[#allocation7 + $0x8c] sm:$0xf]
    %v1783 = vld [vmem:[#allocation7 + $0x90] sm:$0xf]
    %v1784 = vld [vmem:[#allocation7 + $0x94] sm:$0xf]
    %v1785 = vld [vmem:[#allocation7 + $0x98] sm:$0xf]
    %v1786 = vld [vmem:[#allocation7 + $0x9c] sm:$0xf]
    %v1787 = vld [vmem:[#allocation7 + $0xa0] sm:$0xf]
    %v1788 = vld [vmem:[#allocation7 + $0xa4] sm:$0xf]
    %v1789 = vld [vmem:[#allocation7 + $0xa8] sm:$0xf]
    %v1790 = vld [vmem:[#allocation7 + $0xac] sm:$0xf]
    %v1791 = vld [vmem:[#allocation7 + $0xb0] sm:$0xf]
    %v1792 = vld [vmem:[#allocation7 + $0xb4] sm:$0xf]
    %v1793 = vld [vmem:[#allocation7 + $0xb8] sm:$0xf]
    %v1794 = vld [vmem:[#allocation7 + $0xbc] sm:$0xf]
    %v1795 = vld [vmem:[%s5] sm:$0x1]
    %v1797 = vlaneseq
    %v1798 = vshrl.u32 %v1797, 7
    %v1799 = vsub.s32 0, %v1798
    %v1800 = vrot.slane %v1795, %v1799
    %v1850 = vunpack.c.l.b16 %v1747
    %v1851 = vunpack.c.l.b16 %v1748
    %v1852 = vunpack.c.l.b16 %v1749
    %v1853 = vunpack.c.l.b16 %v1750
    %v1854 = vunpack.c.l.b16 %v1751
    %v1855 = vunpack.c.l.b16 %v1752
    %v1856 = vunpack.c.l.b16 %v1753
    %v1857 = vunpack.c.l.b16 %v1754
    %v1858 = vunpack.c.l.b16 %v1755
    %v1859 = vunpack.c.l.b16 %v1756
    %v1860 = vunpack.c.l.b16 %v1757
    %v1861 = vunpack.c.l.b16 %v1758
    %v1862 = vunpack.c.l.b16 %v1759
    %v1863 = vunpack.c.l.b16 %v1760
    %v1864 = vunpack.c.l.b16 %v1761
    %v1865 = vunpack.c.l.b16 %v1762
    %v1866 = vunpack.c.l.b16 %v1763
    %v1867 = vunpack.c.l.b16 %v1764
    %v1868 = vunpack.c.l.b16 %v1765
    %v1869 = vunpack.c.l.b16 %v1766
    %v1870 = vunpack.c.l.b16 %v1767
    %v1871 = vunpack.c.l.b16 %v1768
    %v1872 = vunpack.c.l.b16 %v1769
    %v1873 = vunpack.c.l.b16 %v1770
    %v1874 = vunpack.c.l.b16 %v1771
    %v1875 = vunpack.c.l.b16 %v1772
    %v1876 = vunpack.c.l.b16 %v1773
    %v1877 = vunpack.c.l.b16 %v1774
    %v1878 = vunpack.c.l.b16 %v1775
    %v1879 = vunpack.c.l.b16 %v1776
    %v1880 = vunpack.c.l.b16 %v1777
    %v1881 = vunpack.c.l.b16 %v1778
    %v1882 = vunpack.c.l.b16 %v1779
    %v1883 = vunpack.c.l.b16 %v1780
    %v1884 = vunpack.c.l.b16 %v1781
    %v1885 = vunpack.c.l.b16 %v1782
    %v1886 = vunpack.c.l.b16 %v1783
    %v1887 = vunpack.c.l.b16 %v1784
    %v1888 = vunpack.c.l.b16 %v1785
    %v1889 = vunpack.c.l.b16 %v1786
    %v1890 = vunpack.c.l.b16 %v1787
    %v1891 = vunpack.c.l.b16 %v1788
    %v1892 = vunpack.c.l.b16 %v1789
    %v1893 = vunpack.c.l.b16 %v1790
    %v1894 = vunpack.c.l.b16 %v1791
    %v1895 = vunpack.c.l.b16 %v1792
    %v1896 = vunpack.c.l.b16 %v1793
    %v1897 = vunpack.c.l.b16 %v1794
    %v1898 = vpack.c.b16 %v1851, %v1850
    %v1899 = vpack.c.b16 %v1853, %v1852
    %v1900 = vpack.c.b16 %v1855, %v1854
    %v1901 = vpack.c.b16 %v1857, %v1856
    %v1902 = vpack.c.b16 %v1859, %v1858
    %v1903 = vpack.c.b16 %v1861, %v1860
    %v1904 = vpack.c.b16 %v1863, %v1862
    %v1905 = vpack.c.b16 %v1865, %v1864
    %v1906 = vpack.c.b16 %v1867, %v1866
    %v1907 = vpack.c.b16 %v1869, %v1868
    %v1908 = vpack.c.b16 %v1871, %v1870
    %v1909 = vpack.c.b16 %v1873, %v1872
    %v1910 = vpack.c.b16 %v1875, %v1874
    %v1911 = vpack.c.b16 %v1877, %v1876
    %v1912 = vpack.c.b16 %v1879, %v1878
    %v1913 = vpack.c.b16 %v1881, %v1880
    %v1914 = vpack.c.b16 %v1883, %v1882
    %v1915 = vpack.c.b16 %v1885, %v1884
    %v1916 = vpack.c.b16 %v1887, %v1886
    %v1917 = vpack.c.b16 %v1889, %v1888
    %v1918 = vpack.c.b16 %v1891, %v1890
    %v1919 = vpack.c.b16 %v1893, %v1892
    %v1920 = vpack.c.b16 %v1895, %v1894
    %v1921 = vpack.c.b16 %v1897, %v1896
    %1946 = vmatprep.subr.bf16.mxu0 0
    %1947 = vmatpush1.bf16.msra.mxu0 %v1898
    %1948 = vmatprep.subr.bf16.mxu0 0
    %1949 = vmatpush1.bf16.msra.mxu0 %v1899
    %1950 = vmatprep.subr.bf16.mxu0 0
    %1951 = vmatpush1.bf16.msra.mxu0 %v1900
    %1952 = vmatprep.subr.bf16.mxu0 0
    %1953 = vmatpush1.bf16.msra.mxu0 %v1901
    %1954 = vmatprep.subr.bf16.mxu0 0
    %1955 = vmatpush1.bf16.msra.mxu0 %v1902
    %1956 = vmatprep.subr.bf16.mxu0 0
    %1957 = vmatpush1.bf16.msra.mxu0 %v1903
    %1958 = vmatprep.subr.bf16.mxu0 0
    %1959 = vmatpush1.bf16.msra.mxu0 %v1904
    %1960 = vmatprep.subr.bf16.mxu0 0
    %1961 = vmatpush1.bf16.msra.mxu0 %v1905
    %1962 = vmatprep.subr.bf16.mxu0 0
    %1963 = vmatpush1.bf16.msra.mxu0 %v1906
    %1964 = vmatprep.subr.bf16.mxu0 0
    %1965 = vmatpush1.bf16.msra.mxu0 %v1907
    %1966 = vmatprep.subr.bf16.mxu0 0
    %1967 = vmatpush1.bf16.msra.mxu0 %v1908
    %1968 = vmatprep.subr.bf16.mxu0 0
    %1969 = vmatpush1.bf16.msra.mxu0 %v1909
    %1970 = vmatprep.subr.bf16.mxu0 0
    %1971 = vmatpush1.bf16.msra.mxu0 %v1910
    %1972 = vmatprep.subr.bf16.mxu0 0
    %1973 = vmatpush1.bf16.msra.mxu0 %v1911
    %1974 = vmatprep.subr.bf16.mxu0 0
    %1975 = vmatpush1.bf16.msra.mxu0 %v1912
    %1976 = vmatprep.subr.bf16.mxu0 0
    %1977 = vmatpush1.bf16.msra.mxu0 %v1913
    %1978 = vmatprep.mubr.bf16.mxu0 %v1745
    %1979 = vmatmul.mubr.bf16.gmra.mrb[0].mxu0 %v1744
    %v1980 = vpop.f32.mrb[0].mxu0
    %v1981 = vadd.f32 %v1800, %v1980
    %v1982 = vpop.f32.mrb[0].mxu0
    %v1983 = vpop.f32.mrb[0].mxu0
    %v1984 = vpop.f32.mrb[0].mxu0
    %1985 = vdwg.mxu0
    %1986 = vmatprep.subr.bf16.mxu0 0
    %1987 = vmatpush1.bf16.msra.mxu0 %v1914
    %1988 = vmatprep.subr.bf16.mxu0 0
    %1989 = vmatpush1.bf16.msra.mxu0 %v1915
    %1990 = vmatprep.subr.bf16.mxu0 0
    %1991 = vmatpush1.bf16.msra.mxu0 %v1916
    %1992 = vmatprep.subr.bf16.mxu0 0
    %1993 = vmatpush1.bf16.msra.mxu0 %v1917
    %1994 = vmatprep.subr.bf16.mxu0 0
    %1995 = vmatpush1.bf16.msra.mxu0 %v1918
    %1996 = vmatprep.subr.bf16.mxu0 0
    %1997 = vmatpush1.bf16.msra.mxu0 %v1919
    %1998 = vmatprep.subr.bf16.mxu0 0
    %1999 = vmatpush1.bf16.msra.mxu0 %v1920
    %2000 = vmatprep.subr.bf16.mxu0 0
    %2001 = vmatpush1.bf16.msra.mxu0 %v1921
    %2002 = vmatprep.subr.bf16.mxu0 0
    %2003 = vmatpush1.bf16.msra.mxu0 0
    %2004 = vmatprep.subr.bf16.mxu0 0
    %2005 = vmatpush1.bf16.msra.mxu0 0
    %2006 = vmatprep.subr.bf16.mxu0 0
    %2007 = vmatpush1.bf16.msra.mxu0 0
    %2008 = vmatprep.subr.bf16.mxu0 0
    %2009 = vmatpush1.bf16.msra.mxu0 0
    %2010 = vmatprep.subr.bf16.mxu0 0
    %2011 = vmatpush1.bf16.msra.mxu0 0
    %2012 = vmatprep.subr.bf16.mxu0 0
    %2013 = vmatpush1.bf16.msra.mxu0 0
    %2014 = vmatprep.subr.bf16.mxu0 0
    %2015 = vmatpush1.bf16.msra.mxu0 0
    %2016 = vmatprep.subr.bf16.mxu0 0
    %2017 = vmatpush1.bf16.msra.mxu0 0
    %2018 = vmatprep.mubr.bf16.mxu0 0
    %2019 = vmatmul.mubr.bf16.gmra.mrb[0].mxu0 %v1746
    %v2020 = vpop.f32.mrb[0].mxu0
    %v2021 = vadd.f32 %v1981, %v2020
    %v2022 = vpop.f32.mrb[0].mxu0
    %v2023 = vpop.f32.mrb[0].mxu0
    %v2024 = vpop.f32.mrb[0].mxu0
    %2025 = vdwg.mxu0
    %2026 = vst [vmem:[#allocation8] sm:$0xff] %v2021
    // Predicated region
    $region38: #{tpu_custom_call.1} parent=1 // pred_check
      _
    $region39: #{tpu_custom_call.1} parent=1 // pred_check_branch
      %2028 = sbr.rel (0) target = $region41
    $region40: #{tpu_custom_call.1} parent=1 // pred_region
      %s2030 = ssub.s32 128, 128
      %2031 = vsyncadd [#allocation4], %s2030
      %s2033 = sshll.u32 [#allocation8], 4
      %s2034 = int_to_ptr.vmem [resolvable:$true] %s2033
      %2036 = dma.vmem_to_hbm [thread:$0]  %s2034, 128, %s6, [#allocation4]
    $region41: #{tpu_custom_call.1} parent=1 // pred_fallthru
      _
    // Predicated region
    $region42: #{tpu_custom_call.1} parent=1 // pred_check
      _
    $region43: #{tpu_custom_call.1} parent=1 // pred_check_branch
      %2038 = sbr.rel (0) target = $region45
    $region44: #{tpu_custom_call.1} parent=1 // pred_region
      %s2040 = ssub.s32 128, 128
      %2041 = vsyncadd [#allocation10], %s2040
      %s2043 = sshll.u32 [#allocation9], 4
      %s2044 = int_to_ptr.vmem [resolvable:$true] %s2043
      %2046 = dma.vmem_to_hbm [thread:$0]  %s2044, 128, %s7, [#allocation10]
    $region45: #{tpu_custom_call.1} parent=1 // pred_fallthru
      _
    // Predicated region
    $region46: #{tpu_custom_call.1} parent=1 // pred_check
      _
    $region47: #{tpu_custom_call.1} parent=1 // pred_check_branch
      %2048 = sbr.rel (0) target = $region49
    $region48: #{tpu_custom_call.1} parent=1 // pred_region
      %2049 = dma.done [#allocation4], 128
    $region49: #{tpu_custom_call.1} parent=1 // pred_fallthru
      _
    // Predicated region
    $region50: #{tpu_custom_call.1} parent=1 // pred_check
      _
    $region51: #{tpu_custom_call.1} parent=1 // pred_check_branch
      %2051 = sbr.rel (0) target = $region53
    $region52: #{tpu_custom_call.1} parent=1 // pred_region
      %2052 = dma.done [#allocation10], 128
    $region53: #{tpu_custom_call.1} parent=1 // pred_fallthru
      _
    %2053 = vsyncpa [#allocation3], 1
    %2054 = vsyncpa [#allocation6], 1
    %2055 = vsyncpa [#allocation4], 1
    %2056 = vsyncpa [#allocation10], 1

</llo_original>
